<compile_context>
chip_gen: v5e
topology: v5e:2x2
jax: 0.10.0
libtpu: 0.0.40
codegen_flags: <defaults>
</compile_context>

<pallas_src>
import functools

import jax
import jax.numpy as jnp
from jax import lax
from jax.experimental import pallas as pl
from jax.experimental.pallas import tpu as pltpu

BN_EPS = 1e-5
_VMEM_LIMIT = 32 * 1024 * 1024   # safe scoped-VMEM budget on v5e/v6e/v7x


def _band_matrices(w_oihw, W, pair, out_padded):
    """Fold a 3x3 OIHW conv weight into 3 band matrices (one per kernel row)
    acting on the pair-lane-packed layout.

    Input lanes : pair*(W+2)*Cin (zero-padded width positions).
    Output lanes: pair*(W+2)*Cout if out_padded else pair*W*Cout, so that
        conv(x)[h, :] = sum_dy  x_pad_packed[h+dy, :] @ M[dy].
    The pair slots are strictly block-diagonal -> no cross-image leakage.
    """
    Cout, Cin, KH, KW = w_oihw.shape
    wpc = (W + 2) * Cin
    out_w = (W + 2) * Cout if out_padded else W * Cout
    out_off = Cout if out_padded else 0
    eye_w = jnp.eye(W, dtype=jnp.float32)
    mats = []
    for dy in range(KH):
        m = jnp.zeros((wpc, out_w), jnp.float32)
        for dx in range(KW):
            tap = jnp.transpose(w_oihw[:, :, dy, dx]).astype(jnp.float32)   # (Cin, Cout)
            blk = jnp.einsum("uw,ij->uiwj", eye_w, tap).reshape(W * Cin, W * Cout)
            m = m.at[dx * Cin:(dx + W) * Cin, out_off:out_off + W * Cout].add(blk)
        mats.append(m)
    band = jnp.stack(mats, axis=0)                       # (3, wpc, out_w)
    if pair == 1:
        return band
    z = jnp.zeros_like(band)
    top = jnp.concatenate([band, z], axis=2)
    bot = jnp.concatenate([z, band], axis=2)
    return jnp.concatenate([top, bot], axis=1)           # (3, pair*wpc, pair*out_w)


def _conv1_kernel(xpad_ref, m_ref, ypad_ref, ysum_ref, ysq_ref, *, B, H, lo):
    # xpad_ref: (B, H+2, li) zero-padded, pair-lane-packed images
    # m_ref   : (3, li, lo)  band matrices, lo == li (padded-layout output)
    # ypad_ref: (B, H+2, lo) conv1 output, already padded for call 2
    m0 = m_ref[0]
    m1 = m_ref[1]
    m2 = m_ref[2]
    zrow = jnp.zeros((1, lo), jnp.float32)
    for b in range(B):
        src = xpad_ref[b]                                                    # (H+2, li)
        acc = jnp.dot(src[0:H, :], m0, preferred_element_type=jnp.float32)
        acc = acc + jnp.dot(src[1:H + 1, :], m1, preferred_element_type=jnp.float32)
        acc = acc + jnp.dot(src[2:H + 2, :], m2, preferred_element_type=jnp.float32)
        # Emit y1 already zero-padded: border lanes are zero columns of the band
        # matrices; border rows are written explicitly.  No wrapper jnp.pad.
        ypad_ref[b, 0:1, :] = zrow
        ypad_ref[b, 1:H + 1, :] = acc
        ypad_ref[b, H + 1:H + 2, :] = zrow
        # Single-pass partial BN statistics (padding columns are zero -> harmless).
        ysum_ref[b] = jnp.sum(acc, axis=0, keepdims=True)
        ysq_ref[b] = jnp.sum(acc * acc, axis=0, keepdims=True)


def _conv2_kernel(ypad_ref, m_ref, scale_ref, shift_ref, mask_ref,
                  y2_ref, ysum_ref, ysq_ref, *, B, H):
    # BN1 (precomputed per-lane scale/shift) + ReLU + interior mask, then conv2.
    m0 = m_ref[0]
    m1 = m_ref[1]
    m2 = m_ref[2]
    scale = scale_ref[...]                   # (1, li)
    shift = shift_ref[...]                   # (1, li)
    mask = mask_ref[...]                     # (H+2, li) precomputed interior mask
    for b in range(B):
        y1 = ypad_ref[b]                                                     # (H+2, li)
        src = jnp.maximum(y1 * scale + shift, 0.0) * mask
        acc = jnp.dot(src[0:H, :], m0, preferred_element_type=jnp.float32)
        acc = acc + jnp.dot(src[1:H + 1, :], m1, preferred_element_type=jnp.float32)
        acc = acc + jnp.dot(src[2:H + 2, :], m2, preferred_element_type=jnp.float32)
        y2_ref[b] = acc                                                      # (H, lo=128)
        ysum_ref[b] = jnp.sum(acc, axis=0, keepdims=True)
        ysq_ref[b] = jnp.sum(acc * acc, axis=0, keepdims=True)


def _final_kernel(y2_ref, x_ref, scale_ref, shift_ref, o_ref, *, B, H, lo):
    # BN2 + residual add + ReLU, all lane-dense (lo == 128 for the pair packing).
    y2 = y2_ref[...].reshape(B * H, lo)
    x = x_ref[...].reshape(B * H, lo)
    out = jnp.maximum(y2 * scale_ref[...] + shift_ref[...] + x, 0.0)
    o_ref[...] = out.reshape(B, H, lo)


def _conv1_call(x_pad, m1, *, B, H, li):
    NP = x_pad.shape[0]
    lo = li
    kernel = functools.partial(_conv1_kernel, B=B, H=H, lo=lo)
    return pl.pallas_call(
        kernel,
        grid=(NP // B,),
        in_specs=[
            pl.BlockSpec((B, H + 2, li), lambda n: (n, 0, 0)),
            pl.BlockSpec((3, li, lo), lambda n: (0, 0, 0)),
        ],
        out_specs=(
            pl.BlockSpec((B, H + 2, lo), lambda n: (n, 0, 0)),
            pl.BlockSpec((B, 1, lo), lambda n: (n, 0, 0)),
            pl.BlockSpec((B, 1, lo), lambda n: (n, 0, 0)),
        ),
        out_shape=(
            jax.ShapeDtypeStruct((NP, H + 2, lo), jnp.float32),
            jax.ShapeDtypeStruct((NP, 1, lo), jnp.float32),
            jax.ShapeDtypeStruct((NP, 1, lo), jnp.float32),
        ),
        compiler_params=pltpu.CompilerParams(
            dimension_semantics=("parallel",),
            vmem_limit_bytes=_VMEM_LIMIT),
    )(x_pad, m1)


def _conv2_call(y1_pad, m2, scale_l, shift_l, mask, *, B, H, li, lo):
    NP = y1_pad.shape[0]
    kernel = functools.partial(_conv2_kernel, B=B, H=H)
    return pl.pallas_call(
        kernel,
        grid=(NP // B,),
        in_specs=[
            pl.BlockSpec((B, H + 2, li), lambda n: (n, 0, 0)),
            pl.BlockSpec((3, li, lo), lambda n: (0, 0, 0)),
            pl.BlockSpec((1, li), lambda n: (0, 0)),
            pl.BlockSpec((1, li), lambda n: (0, 0)),
            pl.BlockSpec((H + 2, li), lambda n: (0, 0)),
        ],
        out_specs=(
            pl.BlockSpec((B, H, lo), lambda n: (n, 0, 0)),
            pl.BlockSpec((B, 1, lo), lambda n: (n, 0, 0)),
            pl.BlockSpec((B, 1, lo), lambda n: (n, 0, 0)),
        ),
        out_shape=(
            jax.ShapeDtypeStruct((NP, H, lo), jnp.float32),
            jax.ShapeDtypeStruct((NP, 1, lo), jnp.float32),
            jax.ShapeDtypeStruct((NP, 1, lo), jnp.float32),
        ),
        compiler_params=pltpu.CompilerParams(
            dimension_semantics=("parallel",),
            vmem_limit_bytes=_VMEM_LIMIT),
    )(y1_pad, m2, scale_l, shift_l, mask)


def _final_call(y2, x_packed, scale_l, shift_l, *, B, H, lo):
    NP = y2.shape[0]
    kernel = functools.partial(_final_kernel, B=B, H=H, lo=lo)
    return pl.pallas_call(
        kernel,
        grid=(NP // B,),
        in_specs=[
            pl.BlockSpec((B, H, lo), lambda n: (n, 0, 0)),
            pl.BlockSpec((B, H, lo), lambda n: (n, 0, 0)),
            pl.BlockSpec((1, lo), lambda n: (0, 0)),
            pl.BlockSpec((1, lo), lambda n: (0, 0)),
        ],
        out_specs=pl.BlockSpec((B, H, lo), lambda n: (n, 0, 0)),
        out_shape=jax.ShapeDtypeStruct((NP, H, lo), jnp.float32),
        compiler_params=pltpu.CompilerParams(
            dimension_semantics=("parallel",),
            vmem_limit_bytes=_VMEM_LIMIT),
    )(y2, x_packed, scale_l, shift_l)


def _finalize_bn(ysum, ysq, gamma, beta, count, pair, wpos, C):
    """Per-block partial (sum, sumsq) -> per-channel BN scale/shift (batch stats)."""
    s = jnp.sum(ysum, axis=(0, 1)).reshape(pair, wpos, C).sum(axis=(0, 1))    # (C,)
    sq = jnp.sum(ysq, axis=(0, 1)).reshape(pair, wpos, C).sum(axis=(0, 1))    # (C,)
    mean = s / count
    var = sq / count - mean * mean                                            # biased var
    scale = gamma.astype(jnp.float32) * lax.rsqrt(var + BN_EPS)
    shift = beta.astype(jnp.float32) - mean * scale
    return scale, shift


def _pick_block(NP, cap=8):
    """Pair-groups per grid step: amortize the per-step pipeline overhead while
    keeping the grid extent >= 2 whenever possible (both v7x TensorCores busy)."""
    if NP <= 1:
        return 1
    for b in range(min(NP // 2, cap), 0, -1):
        if NP % b == 0:
            return b
    return 1


@jax.jit
def residual_block(x_nchw, w1_oihw, w2_oihw, gamma1, beta1, gamma2, beta2):
    """PyTorch-compatible wrapper: NCHW in, NCHW out (stride=1, Cin==Cout)."""
    N, C, H, W = x_nchw.shape
    Cout = w1_oihw.shape[0]
    assert C == Cout, "default ResidualBlock config: in_channels == out_channels"
    # TODO(synk): downsample branch (stride != 1 or Cin != Cout) and dropout
    # (use_dropout=True) are not implemented; the module defaults don't use them.

    pair = 2 if N % 2 == 0 else 1          # 2 images per lane group -> 128 lanes
    NP = N // pair
    li = pair * (W + 2) * C                # padded, lane-packed width
    lo = pair * W * C                      # interior, lane-packed width
    B = _pick_block(NP)
    count = float(N * H * W)

    x_nhwc = jnp.transpose(x_nchw, (0, 2, 3, 1)).astype(jnp.float32)          # (N,H,W,C)

    def pack(t):   # (N, H', W', C) -> (NP, H', pair*W'*C), pair slot slowest in lane
        n, hh, ww, c = t.shape
        return (t.reshape(NP, pair, hh, ww * c)
                 .transpose(0, 2, 1, 3)
                 .reshape(NP, hh, pair * ww * c))

    x_packed = pack(x_nhwc)
    x_pad = pack(jnp.pad(x_nhwc, ((0, 0), (1, 1), (1, 1), (0, 0))))

    m1 = _band_matrices(w1_oihw.astype(jnp.float32), W, pair, out_padded=True)
    m2 = _band_matrices(w2_oihw.astype(jnp.float32), W, pair, out_padded=False)

    # Precomputed interior mask (rows 1..H, width positions 1..W of each slot):
    # replaces the per-step iota/compare masking with one multiply.
    row = jnp.arange(H + 2)
    wpos = (jnp.arange(li) % ((W + 2) * C)) // C
    mask = (((row[:, None] >= 1) & (row[:, None] <= H)
             & (wpos[None, :] >= 1) & (wpos[None, :] <= W))
            .astype(jnp.float32))                                             # (H+2, li)

    # ---- call 1: conv1 (padded-layout output) + partial BN1 stats ------------
    y1_pad, ysum1, ysq1 = _conv1_call(x_pad, m1, B=B, H=H, li=li)
    scale1, shift1 = _finalize_bn(ysum1, ysq1, gamma1, beta1, count, pair, W + 2, C)
    scale1_l = jnp.tile(scale1, pair * (W + 2)).reshape(1, li)
    shift1_l = jnp.tile(shift1, pair * (W + 2)).reshape(1, li)

    # ---- call 2: BN1 + ReLU + conv2 + partial BN2 stats -----------------------
    y2, ysum2, ysq2 = _conv2_call(y1_pad, m2, scale1_l, shift1_l, mask,
                                  B=B, H=H, li=li, lo=lo)
    scale2, shift2 = _finalize_bn(ysum2, ysq2, gamma2, beta2, count, pair, W, C)
    scale2_l = jnp.tile(scale2, pair * W).reshape(1, lo)
    shift2_l = jnp.tile(shift2, pair * W).reshape(1, lo)

    # ---- call 3: BN2 + residual add + ReLU ------------------------------------
    out_packed = _final_call(y2, x_packed, scale2_l, shift2_l, B=B, H=H, lo=lo)

    out_nhwc = (out_packed.reshape(NP, H, pair, W, C)
                .transpose(0, 2, 1, 3, 4)
                .reshape(N, H, W, C))
    return jnp.transpose(out_nhwc, (0, 3, 1, 2))                              # NCHW


def _reference(x, w1, w2, g1, b1, g2, b2):
    """Pure-JAX (non-Pallas) reference of the same forward pass."""
    def conv(y, w):
        return lax.conv_general_dilated(
            y, w, window_strides=(1, 1), padding="SAME",
            dimension_numbers=("NCHW", "OIHW", "NCHW"))

    def bn(y, g, b):
        mean = jnp.mean(y, axis=(0, 2, 3), keepdims=True)
        var = jnp.mean((y - mean) ** 2, axis=(0, 2, 3), keepdims=True)
        return (y - mean) * lax.rsqrt(var + BN_EPS) * g.reshape(1, -1, 1, 1) \
               + b.reshape(1, -1, 1, 1)

    h = jax.nn.relu(bn(conv(x, w1), g1, b1))
    return jax.nn.relu(bn(conv(h, w2), g2, b2) + x)


if __name__ == "__main__":
    N, C, H, W = 2, 4, 16, 16      # in_channels = out_channels = 4, stride = 1

    key = jax.random.PRNGKey(0)
    kx, k1, k2 = jax.random.split(key, 3)

    x = jax.random.normal(kx, (N, C, H, W), dtype=jnp.float32)
    # conv weights, PyTorch layout (Cout, Cin, 3, 3)
    w1 = 0.1 * jax.random.normal(k1, (C, C, 3, 3), dtype=jnp.float32)
    w2 = 0.1 * jax.random.normal(k2, (C, C, 3, 3), dtype=jnp.float32)
    # BatchNorm affine params (PyTorch init: weight=1, bias=0)
    gamma1 = jnp.ones((C,), jnp.float32)
    beta1 = jnp.zeros((C,), jnp.float32)
    gamma2 = jnp.ones((C,), jnp.float32)
    beta2 = jnp.zeros((C,), jnp.float32)

    out = residual_block(x, w1, w2, gamma1, beta1, gamma2, beta2)
    out = jax.block_until_ready(out)

    ref = _reference(x, w1, w2, gamma1, beta1, gamma2, beta2)
    assert out.shape == (N, C, H, W)
    max_err = float(jnp.max(jnp.abs(out - ref)))
    assert max_err < 1e-4, f"max abs err {max_err}"

    print("KERNEL_OK")
</pallas_src>

<mosaic_0001>
module attributes {stable_mosaic.version = 11 : i64} {
  func.func @_conv1_kernel(%arg0: i32, %arg1: memref<1x18x144xf32, #tpu.memory_space<vmem>>, %arg2: memref<3x144x144xf32, #tpu.memory_space<vmem>>, %arg3: memref<1x18x144xf32, #tpu.memory_space<vmem>>, %arg4: memref<1x1x144xf32, #tpu.memory_space<vmem>>, %arg5: memref<1x1x144xf32, #tpu.memory_space<vmem>>) attributes {dimension_semantics = [#tpu.dimension_semantics<parallel>], iteration_bounds = array<i64: 1>, scalar_prefetch = 0 : i64, scratch_operands = 0 : i64, tpu.core_type = #tpu.core_type<tc>, window_params = [{transform_indices = @transform_0, window_bounds = array<i64: 1, 18, 144>}, {pipeline_mode = #tpu.pipeline_mode<synchronous>, transform_indices = @transform_1, window_bounds = array<i64: 3, 144, 144>}, {transform_indices = @transform_2, window_bounds = array<i64: 1, 18, 144>}, {transform_indices = @transform_3, window_bounds = array<i64: 1, 1, 144>}, {transform_indices = @transform_4, window_bounds = array<i64: 1, 1, 144>}]} {
    %c0 = arith.constant 0 : index
    %c0_0 = arith.constant 0 : index
    %c0_1 = arith.constant 0 : index
    %0 = vector.load %arg2[%c0, %c0_0, %c0_1] : memref<3x144x144xf32, #tpu.memory_space<vmem>>, vector<1x144x144xf32>
    %1 = vector.shape_cast %0 : vector<1x144x144xf32> to vector<144x144xf32>
    %c1 = arith.constant 1 : index
    %c0_2 = arith.constant 0 : index
    %c0_3 = arith.constant 0 : index
    %2 = vector.load %arg2[%c1, %c0_2, %c0_3] : memref<3x144x144xf32, #tpu.memory_space<vmem>>, vector<1x144x144xf32>
    %3 = vector.shape_cast %2 : vector<1x144x144xf32> to vector<144x144xf32>
    %c2 = arith.constant 2 : index
    %c0_4 = arith.constant 0 : index
    %c0_5 = arith.constant 0 : index
    %4 = vector.load %arg2[%c2, %c0_4, %c0_5] : memref<3x144x144xf32, #tpu.memory_space<vmem>>, vector<1x144x144xf32>
    %5 = vector.shape_cast %4 : vector<1x144x144xf32> to vector<144x144xf32>
    %cst = arith.constant 0.000000e+00 : f32
    %6 = vector.broadcast %cst : f32 to vector<1x144xf32>
    %c0_6 = arith.constant 0 : index
    %c0_7 = arith.constant 0 : index
    %c0_8 = arith.constant 0 : index
    %7 = vector.load %arg1[%c0_6, %c0_7, %c0_8] : memref<1x18x144xf32, #tpu.memory_space<vmem>>, vector<1x18x144xf32>
    %8 = vector.shape_cast %7 : vector<1x18x144xf32> to vector<18x144xf32>
    %9 = vector.extract_strided_slice %8 {offsets = [0, 0], sizes = [16, 144], strides = [1, 1]} : vector<18x144xf32> to vector<16x144xf32>
    %cst_9 = arith.constant dense<0.000000e+00> : vector<16x144xf32>
    %10 = tpu.matmul %9, %1, %cst_9 {dimension_numbers = #tpu.dot_dimension_numbers<[1], [0], [0], [1], [0, 0, 1, 1], [], []>} : vector<16x144xf32>, vector<144x144xf32>, vector<16x144xf32> -> vector<16x144xf32>
    %11 = vector.extract_strided_slice %8 {offsets = [1, 0], sizes = [16, 144], strides = [1, 1]} : vector<18x144xf32> to vector<16x144xf32>
    %cst_10 = arith.constant dense<0.000000e+00> : vector<16x144xf32>
    %12 = tpu.matmul %11, %3, %cst_10 {dimension_numbers = #tpu.dot_dimension_numbers<[1], [0], [0], [1], [0, 0, 1, 1], [], []>} : vector<16x144xf32>, vector<144x144xf32>, vector<16x144xf32> -> vector<16x144xf32>
    %13 = arith.addf %10, %12 : vector<16x144xf32>
    %14 = vector.extract_strided_slice %8 {offsets = [2, 0], sizes = [16, 144], strides = [1, 1]} : vector<18x144xf32> to vector<16x144xf32>
    %cst_11 = arith.constant dense<0.000000e+00> : vector<16x144xf32>
    %15 = tpu.matmul %14, %5, %cst_11 {dimension_numbers = #tpu.dot_dimension_numbers<[1], [0], [0], [1], [0, 0, 1, 1], [], []>} : vector<16x144xf32>, vector<144x144xf32>, vector<16x144xf32> -> vector<16x144xf32>
    %16 = arith.addf %13, %15 : vector<16x144xf32>
    %c0_12 = arith.constant 0 : index
    %c0_13 = arith.constant 0 : index
    %c0_14 = arith.constant 0 : index
    %17 = vector.load %arg3[%c0_12, %c0_13, %c0_14] : memref<1x18x144xf32, #tpu.memory_space<vmem>>, vector<1x1x144xf32>
    %18 = vector.shape_cast %17 : vector<1x1x144xf32> to vector<1x144xf32>
    %19 = vector.shape_cast %6 : vector<1x144xf32> to vector<1x1x144xf32>
    tpu.vector_store %arg3[%c0_12, %c0_13, %c0_14], %19 {strides = array<i32>} : memref<1x18x144xf32, #tpu.memory_space<vmem>>, vector<1x1x144xf32>,
    %c0_15 = arith.constant 0 : index
    %c1_16 = arith.constant 1 : index
    %c0_17 = arith.constant 0 : index
    %20 = vector.load %arg3[%c0_15, %c1_16, %c0_17] : memref<1x18x144xf32, #tpu.memory_space<vmem>>, vector<1x16x144xf32>
    %21 = vector.shape_cast %20 : vector<1x16x144xf32> to vector<16x144xf32>
    %22 = vector.shape_cast %16 : vector<16x144xf32> to vector<1x16x144xf32>
    tpu.vector_store %arg3[%c0_15, %c1_16, %c0_17], %22 {strides = array<i32>} : memref<1x18x144xf32, #tpu.memory_space<vmem>>, vector<1x16x144xf32>,
    %c0_18 = arith.constant 0 : index
    %c17 = arith.constant 17 : index
    %c0_19 = arith.constant 0 : index
    %23 = vector.load %arg3[%c0_18, %c17, %c0_19] : memref<1x18x144xf32, #tpu.memory_space<vmem>>, vector<1x1x144xf32>
    %24 = vector.shape_cast %23 : vector<1x1x144xf32> to vector<1x144xf32>
    %25 = vector.shape_cast %6 : vector<1x144xf32> to vector<1x1x144xf32>
    tpu.vector_store %arg3[%c0_18, %c17, %c0_19], %25 {strides = array<i32>} : memref<1x18x144xf32, #tpu.memory_space<vmem>>, vector<1x1x144xf32>,
    %cst_20 = arith.constant dense<0.000000e+00> : vector<144xf32>
    %26 = vector.multi_reduction <add>, %16, %cst_20 [0] : vector<16x144xf32> to vector<144xf32>
    %27 = vector.shape_cast %26 : vector<144xf32> to vector<1x144xf32>
    %c0_21 = arith.constant 0 : index
    %c0_22 = arith.constant 0 : index
    %c0_23 = arith.constant 0 : index
    %28 = vector.load %arg4[%c0_21, %c0_22, %c0_23] : memref<1x1x144xf32, #tpu.memory_space<vmem>>, vector<1x1x144xf32>
    %29 = vector.shape_cast %28 : vector<1x1x144xf32> to vector<1x144xf32>
    %30 = vector.shape_cast %27 : vector<1x144xf32> to vector<1x1x144xf32>
    tpu.vector_store %arg4[%c0_21, %c0_22, %c0_23], %30 {strides = array<i32>} : memref<1x1x144xf32, #tpu.memory_space<vmem>>, vector<1x1x144xf32>,
    %31 = arith.mulf %16, %16 : vector<16x144xf32>
    %cst_24 = arith.constant dense<0.000000e+00> : vector<144xf32>
    %32 = vector.multi_reduction <add>, %31, %cst_24 [0] : vector<16x144xf32> to vector<144xf32>
    %33 = vector.shape_cast %32 : vector<144xf32> to vector<1x144xf32>
    %c0_25 = arith.constant 0 : index
    %c0_26 = arith.constant 0 : index
    %c0_27 = arith.constant 0 : index
    %34 = vector.load %arg5[%c0_25, %c0_26, %c0_27] : memref<1x1x144xf32, #tpu.memory_space<vmem>>, vector<1x1x144xf32>
    %35 = vector.shape_cast %34 : vector<1x1x144xf32> to vector<1x144xf32>
    %36 = vector.shape_cast %33 : vector<1x144xf32> to vector<1x1x144xf32>
    tpu.vector_store %arg5[%c0_25, %c0_26, %c0_27], %36 {strides = array<i32>} : memref<1x1x144xf32, #tpu.memory_space<vmem>>, vector<1x1x144xf32>,
    return
  }
  func.func @transform_0(%arg0: i32) -> (i32, i32, i32) {
    %c0_i32 = arith.constant 0 : i32
    %c0_i32_0 = arith.constant 0 : i32
    %c0_i32_1 = arith.constant 0 : i32
    return %arg0, %c0_i32, %c0_i32_0 : i32, i32, i32
  }
  func.func @transform_1(%arg0: i32) -> (i32, i32, i32) {
    %c0_i32 = arith.constant 0 : i32
    %c0_i32_0 = arith.constant 0 : i32
    %c0_i32_1 = arith.constant 0 : i32
    %c0_i32_2 = arith.constant 0 : i32
    return %c0_i32, %c0_i32_0, %c0_i32_1 : i32, i32, i32
  }
  func.func @transform_2(%arg0: i32) -> (i32, i32, i32) {
    %c0_i32 = arith.constant 0 : i32
    %c0_i32_0 = arith.constant 0 : i32
    %c0_i32_1 = arith.constant 0 : i32
    return %arg0, %c0_i32, %c0_i32_0 : i32, i32, i32
  }
  func.func @transform_3(%arg0: i32) -> (i32, i32, i32) {
    %c0_i32 = arith.constant 0 : i32
    %c0_i32_0 = arith.constant 0 : i32
    %c0_i32_1 = arith.constant 0 : i32
    return %arg0, %c0_i32, %c0_i32_0 : i32, i32, i32
  }
  func.func @transform_4(%arg0: i32) -> (i32, i32, i32) {
    %c0_i32 = arith.constant 0 : i32
    %c0_i32_0 = arith.constant 0 : i32
    %c0_i32_1 = arith.constant 0 : i32
    return %arg0, %c0_i32, %c0_i32_0 : i32, i32, i32
  }
}

module attributes {stable_mosaic.version = 11 : i64} {
  func.func @_conv2_kernel(%arg0: i32, %arg1: memref<1x18x144xf32, #tpu.memory_space<vmem>>, %arg2: memref<3x144x128xf32, #tpu.memory_space<vmem>>, %arg3: memref<1x144xf32, #tpu.memory_space<vmem>>, %arg4: memref<1x144xf32, #tpu.memory_space<vmem>>, %arg5: memref<18x144xf32, #tpu.memory_space<vmem>>, %arg6: memref<1x16x128xf32, #tpu.memory_space<vmem>>, %arg7: memref<1x1x128xf32, #tpu.memory_space<vmem>>, %arg8: memref<1x1x128xf32, #tpu.memory_space<vmem>>) attributes {dimension_semantics = [#tpu.dimension_semantics<parallel>], iteration_bounds = array<i64: 1>, scalar_prefetch = 0 : i64, scratch_operands = 0 : i64, tpu.core_type = #tpu.core_type<tc>, window_params = [{transform_indices = @transform_0, window_bounds = array<i64: 1, 18, 144>}, {pipeline_mode = #tpu.pipeline_mode<synchronous>, transform_indices = @transform_1, window_bounds = array<i64: 3, 144, 128>}, {pipeline_mode = #tpu.pipeline_mode<synchronous>, transform_indices = @transform_2, window_bounds = array<i64: 1, 144>}, {pipeline_mode = #tpu.pipeline_mode<synchronous>, transform_indices = @transform_3, window_bounds = array<i64: 1, 144>}, {pipeline_mode = #tpu.pipeline_mode<synchronous>, transform_indices = @transform_4, window_bounds = array<i64: 18, 144>}, {transform_indices = @transform_5, window_bounds = array<i64: 1, 16, 128>}, {transform_indices = @transform_6, window_bounds = array<i64: 1, 1, 128>}, {transform_indices = @transform_7, window_bounds = array<i64: 1, 1, 128>}]} {
    %c0 = arith.constant 0 : index
    %c0_0 = arith.constant 0 : index
    %c0_1 = arith.constant 0 : index
    %0 = vector.load %arg2[%c0, %c0_0, %c0_1] : memref<3x144x128xf32, #tpu.memory_space<vmem>>, vector<1x144x128xf32>
    %1 = vector.shape_cast %0 : vector<1x144x128xf32> to vector<144x128xf32>
    %c1 = arith.constant 1 : index
    %c0_2 = arith.constant 0 : index
    %c0_3 = arith.constant 0 : index
    %2 = vector.load %arg2[%c1, %c0_2, %c0_3] : memref<3x144x128xf32, #tpu.memory_space<vmem>>, vector<1x144x128xf32>
    %3 = vector.shape_cast %2 : vector<1x144x128xf32> to vector<144x128xf32>
    %c2 = arith.constant 2 : index
    %c0_4 = arith.constant 0 : index
    %c0_5 = arith.constant 0 : index
    %4 = vector.load %arg2[%c2, %c0_4, %c0_5] : memref<3x144x128xf32, #tpu.memory_space<vmem>>, vector<1x144x128xf32>
    %5 = vector.shape_cast %4 : vector<1x144x128xf32> to vector<144x128xf32>
    %c0_6 = arith.constant 0 : index
    %c0_7 = arith.constant 0 : index
    %6 = vector.load %arg3[%c0_6, %c0_7] : memref<1x144xf32, #tpu.memory_space<vmem>>, vector<1x144xf32>
    %c0_8 = arith.constant 0 : index
    %c0_9 = arith.constant 0 : index
    %7 = vector.load %arg4[%c0_8, %c0_9] : memref<1x144xf32, #tpu.memory_space<vmem>>, vector<1x144xf32>
    %c0_10 = arith.constant 0 : index
    %c0_11 = arith.constant 0 : index
    %8 = vector.load %arg5[%c0_10, %c0_11] : memref<18x144xf32, #tpu.memory_space<vmem>>, vector<18x144xf32>
    %c0_12 = arith.constant 0 : index
    %c0_13 = arith.constant 0 : index
    %c0_14 = arith.constant 0 : index
    %9 = vector.load %arg1[%c0_12, %c0_13, %c0_14] : memref<1x18x144xf32, #tpu.memory_space<vmem>>, vector<1x18x144xf32>
    %10 = vector.shape_cast %9 : vector<1x18x144xf32> to vector<18x144xf32>
    %11 = vector.broadcast %6 : vector<1x144xf32> to vector<18x144xf32>
    %12 = arith.mulf %10, %11 : vector<18x144xf32>
    %13 = vector.broadcast %7 : vector<1x144xf32> to vector<18x144xf32>
    %14 = arith.addf %12, %13 : vector<18x144xf32>
    %cst = arith.constant 0.000000e+00 : f32
    %15 = vector.broadcast %cst : f32 to vector<18x144xf32>
    %16 = arith.maximumf %14, %15 : vector<18x144xf32>
    %17 = arith.mulf %16, %8 : vector<18x144xf32>
    %18 = vector.extract_strided_slice %17 {offsets = [0, 0], sizes = [16, 144], strides = [1, 1]} : vector<18x144xf32> to vector<16x144xf32>
    %cst_15 = arith.constant dense<0.000000e+00> : vector<16x128xf32>
    %19 = tpu.matmul %18, %1, %cst_15 {dimension_numbers = #tpu.dot_dimension_numbers<[1], [0], [0], [1], [0, 0, 1, 1], [], []>} : vector<16x144xf32>, vector<144x128xf32>, vector<16x128xf32> -> vector<16x128xf32>
    %20 = vector.extract_strided_slice %17 {offsets = [1, 0], sizes = [16, 144], strides = [1, 1]} : vector<18x144xf32> to vector<16x144xf32>
    %cst_16 = arith.constant dense<0.000000e+00> : vector<16x128xf32>
    %21 = tpu.matmul %20, %3, %cst_16 {dimension_numbers = #tpu.dot_dimension_numbers<[1], [0], [0], [1], [0, 0, 1, 1], [], []>} : vector<16x144xf32>, vector<144x128xf32>, vector<16x128xf32> -> vector<16x128xf32>
    %22 = arith.addf %19, %21 : vector<16x128xf32>
    %23 = vector.extract_strided_slice %17 {offsets = [2, 0], sizes = [16, 144], strides = [1, 1]} : vector<18x144xf32> to vector<16x144xf32>
    %cst_17 = arith.constant dense<0.000000e+00> : vector<16x128xf32>
    %24 = tpu.matmul %23, %5, %cst_17 {dimension_numbers = #tpu.dot_dimension_numbers<[1], [0], [0], [1], [0, 0, 1, 1], [], []>} : vector<16x144xf32>, vector<144x128xf32>, vector<16x128xf32> -> vector<16x128xf32>
    %25 = arith.addf %22, %24 : vector<16x128xf32>
    %c0_18 = arith.constant 0 : index
    %c0_19 = arith.constant 0 : index
    %c0_20 = arith.constant 0 : index
    %26 = vector.load %arg6[%c0_18, %c0_19, %c0_20] : memref<1x16x128xf32, #tpu.memory_space<vmem>>, vector<1x16x128xf32>
    %27 = vector.shape_cast %26 : vector<1x16x128xf32> to vector<16x128xf32>
    %28 = vector.shape_cast %25 : vector<16x128xf32> to vector<1x16x128xf32>
    tpu.vector_store %arg6[%c0_18, %c0_19, %c0_20], %28 {strides = array<i32>} : memref<1x16x128xf32, #tpu.memory_space<vmem>>, vector<1x16x128xf32>,
    %cst_21 = arith.constant dense<0.000000e+00> : vector<128xf32>
    %29 = vector.multi_reduction <add>, %25, %cst_21 [0] : vector<16x128xf32> to vector<128xf32>
    %30 = vector.shape_cast %29 : vector<128xf32> to vector<1x128xf32>
    %c0_22 = arith.constant 0 : index
    %c0_23 = arith.constant 0 : index
    %c0_24 = arith.constant 0 : index
    %31 = vector.load %arg7[%c0_22, %c0_23, %c0_24] : memref<1x1x128xf32, #tpu.memory_space<vmem>>, vector<1x1x128xf32>
    %32 = vector.shape_cast %31 : vector<1x1x128xf32> to vector<1x128xf32>
    %33 = vector.shape_cast %30 : vector<1x128xf32> to vector<1x1x128xf32>
    tpu.vector_store %arg7[%c0_22, %c0_23, %c0_24], %33 {strides = array<i32>} : memref<1x1x128xf32, #tpu.memory_space<vmem>>, vector<1x1x128xf32>,
    %34 = arith.mulf %25, %25 : vector<16x128xf32>
    %cst_25 = arith.constant dense<0.000000e+00> : vector<128xf32>
    %35 = vector.multi_reduction <add>, %34, %cst_25 [0] : vector<16x128xf32> to vector<128xf32>
    %36 = vector.shape_cast %35 : vector<128xf32> to vector<1x128xf32>
    %c0_26 = arith.constant 0 : index
    %c0_27 = arith.constant 0 : index
    %c0_28 = arith.constant 0 : index
    %37 = vector.load %arg8[%c0_26, %c0_27, %c0_28] : memref<1x1x128xf32, #tpu.memory_space<vmem>>, vector<1x1x128xf32>
    %38 = vector.shape_cast %37 : vector<1x1x128xf32> to vector<1x128xf32>
    %39 = vector.shape_cast %36 : vector<1x128xf32> to vector<1x1x128xf32>
    tpu.vector_store %arg8[%c0_26, %c0_27, %c0_28], %39 {strides = array<i32>} : memref<1x1x128xf32, #tpu.memory_space<vmem>>, vector<1x1x128xf32>,
    return
  }
  func.func @transform_0(%arg0: i32) -> (i32, i32, i32) {
    %c0_i32 = arith.constant 0 : i32
    %c0_i32_0 = arith.constant 0 : i32
    %c0_i32_1 = arith.constant 0 : i32
    return %arg0, %c0_i32, %c0_i32_0 : i32, i32, i32
  }
  func.func @transform_1(%arg0: i32) -> (i32, i32, i32) {
    %c0_i32 = arith.constant 0 : i32
    %c0_i32_0 = arith.constant 0 : i32
    %c0_i32_1 = arith.constant 0 : i32
    %c0_i32_2 = arith.constant 0 : i32
    return %c0_i32, %c0_i32_0, %c0_i32_1 : i32, i32, i32
  }
  func.func @transform_2(%arg0: i32) -> (i32, i32) {
    %c0_i32 = arith.constant 0 : i32
    %c0_i32_0 = arith.constant 0 : i32
    %c0_i32_1 = arith.constant 0 : i32
    return %c0_i32, %c0_i32_0 : i32, i32
  }
  func.func @transform_3(%arg0: i32) -> (i32, i32) {
    %c0_i32 = arith.constant 0 : i32
    %c0_i32_0 = arith.constant 0 : i32
    %c0_i32_1 = arith.constant 0 : i32
    return %c0_i32, %c0_i32_0 : i32, i32
  }
  func.func @transform_4(%arg0: i32) -> (i32, i32) {
    %c0_i32 = arith.constant 0 : i32
    %c0_i32_0 = arith.constant 0 : i32
    %c0_i32_1 = arith.constant 0 : i32
    return %c0_i32, %c0_i32_0 : i32, i32
  }
  func.func @transform_5(%arg0: i32) -> (i32, i32, i32) {
    %c0_i32 = arith.constant 0 : i32
    %c0_i32_0 = arith.constant 0 : i32
    %c0_i32_1 = arith.constant 0 : i32
    return %arg0, %c0_i32, %c0_i32_0 : i32, i32, i32
  }
  func.func @transform_6(%arg0: i32) -> (i32, i32, i32) {
    %c0_i32 = arith.constant 0 : i32
    %c0_i32_0 = arith.constant 0 : i32
    %c0_i32_1 = arith.constant 0 : i32
    return %arg0, %c0_i32, %c0_i32_0 : i32, i32, i32
  }
  func.func @transform_7(%arg0: i32) -> (i32, i32, i32) {
    %c0_i32 = arith.constant 0 : i32
    %c0_i32_0 = arith.constant 0 : i32
    %c0_i32_1 = arith.constant 0 : i32
    return %arg0, %c0_i32, %c0_i32_0 : i32, i32, i32
  }
}

module attributes {stable_mosaic.version = 11 : i64} {
  func.func @_final_kernel(%arg0: i32, %arg1: memref<1x16x128xf32, #tpu.memory_space<vmem>>, %arg2: memref<1x16x128xf32, #tpu.memory_space<vmem>>, %arg3: memref<1x128xf32, #tpu.memory_space<vmem>>, %arg4: memref<1x128xf32, #tpu.memory_space<vmem>>, %arg5: memref<1x16x128xf32, #tpu.memory_space<vmem>>) attributes {dimension_semantics = [#tpu.dimension_semantics<parallel>], iteration_bounds = array<i64: 1>, scalar_prefetch = 0 : i64, scratch_operands = 0 : i64, tpu.core_type = #tpu.core_type<tc>, window_params = [{transform_indices = @transform_0, window_bounds = array<i64: 1, 16, 128>}, {transform_indices = @transform_1, window_bounds = array<i64: 1, 16, 128>}, {pipeline_mode = #tpu.pipeline_mode<synchronous>, transform_indices = @transform_2, window_bounds = array<i64: 1, 128>}, {pipeline_mode = #tpu.pipeline_mode<synchronous>, transform_indices = @transform_3, window_bounds = array<i64: 1, 128>}, {transform_indices = @transform_4, window_bounds = array<i64: 1, 16, 128>}]} {
    %c0 = arith.constant 0 : index
    %c0_0 = arith.constant 0 : index
    %c0_1 = arith.constant 0 : index
    %0 = vector.load %arg1[%c0, %c0_0, %c0_1] : memref<1x16x128xf32, #tpu.memory_space<vmem>>, vector<1x16x128xf32>
    %1 = vector.shape_cast %0 : vector<1x16x128xf32> to vector<16x128xf32>
    %c0_2 = arith.constant 0 : index
    %c0_3 = arith.constant 0 : index
    %c0_4 = arith.constant 0 : index
    %2 = vector.load %arg2[%c0_2, %c0_3, %c0_4] : memref<1x16x128xf32, #tpu.memory_space<vmem>>, vector<1x16x128xf32>
    %3 = vector.shape_cast %2 : vector<1x16x128xf32> to vector<16x128xf32>
    %c0_5 = arith.constant 0 : index
    %c0_6 = arith.constant 0 : index
    %4 = vector.load %arg3[%c0_5, %c0_6] : memref<1x128xf32, #tpu.memory_space<vmem>>, vector<1x128xf32>
    %5 = vector.broadcast %4 : vector<1x128xf32> to vector<16x128xf32>
    %6 = arith.mulf %1, %5 : vector<16x128xf32>
    %c0_7 = arith.constant 0 : index
    %c0_8 = arith.constant 0 : index
    %7 = vector.load %arg4[%c0_7, %c0_8] : memref<1x128xf32, #tpu.memory_space<vmem>>, vector<1x128xf32>
    %8 = vector.broadcast %7 : vector<1x128xf32> to vector<16x128xf32>
    %9 = arith.addf %6, %8 : vector<16x128xf32>
    %10 = arith.addf %9, %3 : vector<16x128xf32>
    %cst = arith.constant 0.000000e+00 : f32
    %11 = vector.broadcast %cst : f32 to vector<16x128xf32>
    %12 = arith.maximumf %10, %11 : vector<16x128xf32>
    %13 = vector.shape_cast %12 : vector<16x128xf32> to vector<1x16x128xf32>
    %c0_9 = arith.constant 0 : index
    %c0_10 = arith.constant 0 : index
    %c0_11 = arith.constant 0 : index
    %14 = vector.load %arg5[%c0_9, %c0_10, %c0_11] : memref<1x16x128xf32, #tpu.memory_space<vmem>>, vector<1x16x128xf32>
    tpu.vector_store %arg5[%c0_9, %c0_10, %c0_11], %13 {strides = array<i32>} : memref<1x16x128xf32, #tpu.memory_space<vmem>>, vector<1x16x128xf32>,
    return
  }
  func.func @transform_0(%arg0: i32) -> (i32, i32, i32) {
    %c0_i32 = arith.constant 0 : i32
    %c0_i32_0 = arith.constant 0 : i32
    %c0_i32_1 = arith.constant 0 : i32
    return %arg0, %c0_i32, %c0_i32_0 : i32, i32, i32
  }
  func.func @transform_1(%arg0: i32) -> (i32, i32, i32) {
    %c0_i32 = arith.constant 0 : i32
    %c0_i32_0 = arith.constant 0 : i32
    %c0_i32_1 = arith.constant 0 : i32
    return %arg0, %c0_i32, %c0_i32_0 : i32, i32, i32
  }
  func.func @transform_2(%arg0: i32) -> (i32, i32) {
    %c0_i32 = arith.constant 0 : i32
    %c0_i32_0 = arith.constant 0 : i32
    %c0_i32_1 = arith.constant 0 : i32
    return %c0_i32, %c0_i32_0 : i32, i32
  }
  func.func @transform_3(%arg0: i32) -> (i32, i32) {
    %c0_i32 = arith.constant 0 : i32
    %c0_i32_0 = arith.constant 0 : i32
    %c0_i32_1 = arith.constant 0 : i32
    return %c0_i32, %c0_i32_0 : i32, i32
  }
  func.func @transform_4(%arg0: i32) -> (i32, i32, i32) {
    %c0_i32 = arith.constant 0 : i32
    %c0_i32_0 = arith.constant 0 : i32
    %c0_i32_1 = arith.constant 0 : i32
    return %arg0, %c0_i32, %c0_i32_0 : i32, i32, i32
  }
}

</mosaic_0001>

<llo_original>
// kernel: tile.23
$region0: #{tile.23}
  #allocation0 [shape = 's32[1]{0}', space=sflag, size = 0x4, scoped, tag = 'scoped memory for tile.23']
  %s0 = inlined_call_operand.vmem [shape: f32[4], index: 0, kind: input, shape index: {}]
  %s1 = inlined_call_operand.vmem [shape: f32[36,4], index: 1, kind: output, shape index: {}]
  // Predicated region
  $region2: #{tile.23} parent=0 // pred_check
    _
  $region3: #{tile.23} parent=0 // pred_check_branch
    %3 = sbr.rel (0) target = $region5
  $region4: #{tile.23} parent=0 // pred_region
    _
  $region5: #{tile.23} parent=0 // pred_fallthru
    _
  %v4 = vld [vmem:[%s0] ss:$0 sm:$0xff]
  %5 = vst [vmem:[%s1] sm:$0xff] %v4
  %s6 = scalar_lea.vmem %s1, 8
  %7 = vst [vmem:[%s6] sm:$0xff] %v4
  %s8 = scalar_lea.vmem %s1, 16
  %9 = vst [vmem:[%s8] sm:$0xff] %v4
  %s10 = scalar_lea.vmem %s1, 24
  %11 = vst [vmem:[%s10] sm:$0xff] %v4
  %s12 = scalar_lea.vmem %s1, 32
  %13 = vst [vmem:[%s12] sm:$0xff] %v4

// kernel: tile.24
$region0: #{tile.24}
  %s0 = inlined_call_operand.vmem [shape: f32[36,4], index: 0, kind: input, shape index: {}]
  %s1 = inlined_call_operand.vmem [shape: f32[1,144], index: 1, kind: output, shape index: {}]
  $region1: #{tile.24} parent=0
    #allocation0 [shape = 'u8[8192]{0}', space=vmem, size = 0x2000, scoped, tag = 'scoped mem for output reshape']
    %v2 = vld [vmem:[%s0] sm:$0x1]
    %s3 = scalar_lea.vmem %s0, 31
    %v4 = vld [vmem:[%s3] sm:$0x2]
    %vm5 = vcmask 1041409
    %v6 = vsel %vm5, %v4, %v2
    %vm7 = vcmask 31744
    %8 = vst.msk [vmem:[#allocation0] ss:$8 sm:$0x3] %vm7, %v6
    %s9 = scalar_lea.vmem %s0, 31
    %v10 = vld [vmem:[%s9] sm:$0x1]
    %11 = vrot.lane.b32.xlu0 %v10, 124
    %v12 = vpop.permute.xlu0 %11
    %vm13 = vcmask 1048544
    %14 = vst.msk [vmem:[#allocation0] sm:$0x1] %vm13, %v12
    %s15 = scalar_lea.vmem %s0, 30
    %v16 = vld [vmem:[%s15] sm:$0x1]
    %17 = vrot.lane.b32.xlu0 %v16, 120
    %v18 = vpop.permute.xlu0 %17
    %vm19 = vcmask 1015744
    %20 = vst.msk [vmem:[#allocation0] sm:$0x1] %vm19, %v18
    %s21 = scalar_lea.vmem %s0, 29
    %v22 = vld [vmem:[%s21] sm:$0x1]
    %23 = vrot.lane.b32.xlu0 %v22, 116
    %v24 = vpop.permute.xlu0 %23
    %vm25 = vcmask 982944
    %26 = vst.msk [vmem:[#allocation0] sm:$0x1] %vm25, %v24
    %s27 = scalar_lea.vmem %s0, 28
    %v28 = vld [vmem:[%s27] sm:$0x1]
    %29 = vrot.lane.b32.xlu0 %v28, 112
    %v30 = vpop.permute.xlu0 %29
    %vm31 = vcmask 950144
    %32 = vst.msk [vmem:[#allocation0] sm:$0x1] %vm31, %v30
    %s33 = scalar_lea.vmem %s0, 27
    %v34 = vld [vmem:[%s33] sm:$0x1]
    %35 = vrot.lane.b32.xlu0 %v34, 108
    %v36 = vpop.permute.xlu0 %35
    %vm37 = vcmask 917344
    %38 = vst.msk [vmem:[#allocation0] sm:$0x1] %vm37, %v36
    %s39 = scalar_lea.vmem %s0, 26
    %v40 = vld [vmem:[%s39] sm:$0x1]
    %41 = vrot.lane.b32.xlu0 %v40, 104
    %v42 = vpop.permute.xlu0 %41
    %vm43 = vcmask 884544
    %44 = vst.msk [vmem:[#allocation0] sm:$0x1] %vm43, %v42
    %s45 = scalar_lea.vmem %s0, 25
    %v46 = vld [vmem:[%s45] sm:$0x1]
    %47 = vrot.lane.b32.xlu0 %v46, 100
    %v48 = vpop.permute.xlu0 %47
    %vm49 = vcmask 851744
    %50 = vst.msk [vmem:[#allocation0] sm:$0x1] %vm49, %v48
    %s51 = scalar_lea.vmem %s0, 24
    %v52 = vld [vmem:[%s51] sm:$0x1]
    %53 = vrot.lane.b32.xlu0 %v52, 96
    %v54 = vpop.permute.xlu0 %53
    %vm55 = vcmask 818944
    %56 = vst.msk [vmem:[#allocation0] sm:$0x1] %vm55, %v54
    %s57 = scalar_lea.vmem %s0, 23
    %v58 = vld [vmem:[%s57] sm:$0x1]
    %59 = vrot.lane.b32.xlu0 %v58, 92
    %v60 = vpop.permute.xlu0 %59
    %vm61 = vcmask 786144
    %62 = vst.msk [vmem:[#allocation0] sm:$0x1] %vm61, %v60
    %s63 = scalar_lea.vmem %s0, 22
    %v64 = vld [vmem:[%s63] sm:$0x1]
    %65 = vrot.lane.b32.xlu0 %v64, 88
    %v66 = vpop.permute.xlu0 %65
    %vm67 = vcmask 753344
    %68 = vst.msk [vmem:[#allocation0] sm:$0x1] %vm67, %v66
    %s69 = scalar_lea.vmem %s0, 21
    %v70 = vld [vmem:[%s69] sm:$0x1]
    %71 = vrot.lane.b32.xlu0 %v70, 84
    %v72 = vpop.permute.xlu0 %71
    %vm73 = vcmask 720544
    %74 = vst.msk [vmem:[#allocation0] sm:$0x1] %vm73, %v72
    %s75 = scalar_lea.vmem %s0, 20
    %v76 = vld [vmem:[%s75] sm:$0x1]
    %77 = vrot.lane.b32.xlu0 %v76, 80
    %v78 = vpop.permute.xlu0 %77
    %vm79 = vcmask 687744
    %80 = vst.msk [vmem:[#allocation0] sm:$0x1] %vm79, %v78
    %s81 = scalar_lea.vmem %s0, 19
    %v82 = vld [vmem:[%s81] sm:$0x1]
    %83 = vrot.lane.b32.xlu0 %v82, 76
    %v84 = vpop.permute.xlu0 %83
    %vm85 = vcmask 654944
    %86 = vst.msk [vmem:[#allocation0] sm:$0x1] %vm85, %v84
    %s87 = scalar_lea.vmem %s0, 18
    %v88 = vld [vmem:[%s87] sm:$0x1]
    %89 = vrot.lane.b32.xlu0 %v88, 72
    %v90 = vpop.permute.xlu0 %89
    %vm91 = vcmask 622144
    %92 = vst.msk [vmem:[#allocation0] sm:$0x1] %vm91, %v90
    %s93 = scalar_lea.vmem %s0, 17
    %v94 = vld [vmem:[%s93] sm:$0x1]
    %95 = vrot.lane.b32.xlu0 %v94, 68
    %v96 = vpop.permute.xlu0 %95
    %vm97 = vcmask 589344
    %98 = vst.msk [vmem:[#allocation0] sm:$0x1] %vm97, %v96
    %s99 = scalar_lea.vmem %s0, 16
    %v100 = vld [vmem:[%s99] sm:$0x1]
    %101 = vrot.lane.b32.xlu0 %v100, 64
    %v102 = vpop.permute.xlu0 %101
    %vm103 = vcmask 556544
    %104 = vst.msk [vmem:[#allocation0] sm:$0x1] %vm103, %v102
    %s105 = scalar_lea.vmem %s0, 15
    %v106 = vld [vmem:[%s105] sm:$0x1]
    %107 = vrot.lane.b32.xlu0 %v106, 60
    %v108 = vpop.permute.xlu0 %107
    %vm109 = vcmask 523744
    %110 = vst.msk [vmem:[#allocation0] sm:$0x1] %vm109, %v108
    %s111 = scalar_lea.vmem %s0, 14
    %v112 = vld [vmem:[%s111] sm:$0x1]
    %113 = vrot.lane.b32.xlu0 %v112, 56
    %v114 = vpop.permute.xlu0 %113
    %vm115 = vcmask 490944
    %116 = vst.msk [vmem:[#allocation0] sm:$0x1] %vm115, %v114
    %s117 = scalar_lea.vmem %s0, 13
    %v118 = vld [vmem:[%s117] sm:$0x1]
    %119 = vrot.lane.b32.xlu0 %v118, 52
    %v120 = vpop.permute.xlu0 %119
    %vm121 = vcmask 458144
    %122 = vst.msk [vmem:[#allocation0] sm:$0x1] %vm121, %v120
    %s123 = scalar_lea.vmem %s0, 12
    %v124 = vld [vmem:[%s123] sm:$0x1]
    %125 = vrot.lane.b32.xlu0 %v124, 48
    %v126 = vpop.permute.xlu0 %125
    %vm127 = vcmask 425344
    %128 = vst.msk [vmem:[#allocation0] sm:$0x1] %vm127, %v126
    %s129 = scalar_lea.vmem %s0, 11
    %v130 = vld [vmem:[%s129] sm:$0x1]
    %131 = vrot.lane.b32.xlu0 %v130, 44
    %v132 = vpop.permute.xlu0 %131
    %vm133 = vcmask 392544
    %134 = vst.msk [vmem:[#allocation0] sm:$0x1] %vm133, %v132
    %s135 = scalar_lea.vmem %s0, 10
    %v136 = vld [vmem:[%s135] sm:$0x1]
    %137 = vrot.lane.b32.xlu0 %v136, 40
    %v138 = vpop.permute.xlu0 %137
    %vm139 = vcmask 359744
    %140 = vst.msk [vmem:[#allocation0] sm:$0x1] %vm139, %v138
    %s141 = scalar_lea.vmem %s0, 9
    %v142 = vld [vmem:[%s141] sm:$0x1]
    %143 = vrot.lane.b32.xlu0 %v142, 36
    %v144 = vpop.permute.xlu0 %143
    %vm145 = vcmask 326944
    %146 = vst.msk [vmem:[#allocation0] sm:$0x1] %vm145, %v144
    %s147 = scalar_lea.vmem %s0, 8
    %v148 = vld [vmem:[%s147] sm:$0x1]
    %149 = vrot.lane.b32.xlu0 %v148, 32
    %v150 = vpop.permute.xlu0 %149
    %vm151 = vcmask 294144
    %152 = vst.msk [vmem:[#allocation0] sm:$0x1] %vm151, %v150
    %s153 = scalar_lea.vmem %s0, 7
    %v154 = vld [vmem:[%s153] sm:$0x1]
    %155 = vrot.lane.b32.xlu0 %v154, 28
    %v156 = vpop.permute.xlu0 %155
    %vm157 = vcmask 261344
    %158 = vst.msk [vmem:[#allocation0] sm:$0x1] %vm157, %v156
    %s159 = scalar_lea.vmem %s0, 6
    %v160 = vld [vmem:[%s159] sm:$0x1]
    %161 = vrot.lane.b32.xlu0 %v160, 24
    %v162 = vpop.permute.xlu0 %161
    %vm163 = vcmask 228544
    %164 = vst.msk [vmem:[#allocation0] sm:$0x1] %vm163, %v162
    %s165 = scalar_lea.vmem %s0, 5
    %v166 = vld [vmem:[%s165] sm:$0x1]
    %167 = vrot.lane.b32.xlu0 %v166, 20
    %v168 = vpop.permute.xlu0 %167
    %vm169 = vcmask 195744
    %170 = vst.msk [vmem:[#allocation0] sm:$0x1] %vm169, %v168
    %s171 = scalar_lea.vmem %s0, 4
    %v172 = vld [vmem:[%s171] sm:$0x1]
    %173 = vrot.lane.b32.xlu0 %v172, 16
    %v174 = vpop.permute.xlu0 %173
    %vm175 = vcmask 162944
    %176 = vst.msk [vmem:[#allocation0] sm:$0x1] %vm175, %v174
    %s177 = scalar_lea.vmem %s0, 3
    %v178 = vld [vmem:[%s177] sm:$0x1]
    %s179 = scalar_lea.vmem %s0, 34
    %v180 = vld [vmem:[%s179] sm:$0x2]
    %vm181 = vcmask 1041409
    %v182 = vsel %vm181, %v180, %v178
    %183 = vrot.lane.b32.xlu0 %v182, 12
    %v184 = vpop.permute.xlu0 %183
    %vm185 = vcmask 130144
    %186 = vst.msk [vmem:[#allocation0] ss:$8 sm:$0x3] %vm185, %v184
    %s187 = scalar_lea.vmem %s0, 2
    %v188 = vld [vmem:[%s187] sm:$0x1]
    %s189 = scalar_lea.vmem %s0, 33
    %v190 = vld [vmem:[%s189] sm:$0x2]
    %vm191 = vcmask 1041409
    %v192 = vsel %vm191, %v190, %v188
    %193 = vrot.lane.b32.xlu0 %v192, 8
    %v194 = vpop.permute.xlu0 %193
    %vm195 = vcmask 97344
    %196 = vst.msk [vmem:[#allocation0] ss:$8 sm:$0x3] %vm195, %v194
    %s197 = scalar_lea.vmem %s0, 1
    %v198 = vld [vmem:[%s197] sm:$0x1]
    %s199 = scalar_lea.vmem %s0, 32
    %v200 = vld [vmem:[%s199] sm:$0x2]
    %vm201 = vcmask 1041409
    %v202 = vsel %vm201, %v200, %v198
    %203 = vrot.lane.b32.xlu0 %v202, 4
    %v204 = vpop.permute.xlu0 %203
    %vm205 = vcmask 64544
    %206 = vst.msk [vmem:[#allocation0] ss:$8 sm:$0x3] %vm205, %v204
    %s208 = ssub.s32 2, 1
    %v209 = vld [vmem:[#allocation0] sm:%s208]
    %s211 = ssub.s32 2, 1
    %212 = vst [vmem:[%s1] sm:%s211] %v209
    %s213 = scalar_lea.vmem [#allocation0], 8
    %v214 = vld [vmem:[%s213] sm:%s208]
    %s216 = ssub.s32 2, 1
    %s217 = scalar_lea.vmem %s1, 1
    %218 = vst [vmem:[%s217] sm:%s216] %v214

// kernel: tile.33
$region0: #{tile.33}
  #allocation0 [shape = 's32[1]{0}', space=sflag, size = 0x4, scoped, tag = 'scoped memory for tile.33']
  %s0 = inlined_call_operand.vmem [shape: f32[4], index: 0, kind: input, shape index: {}]
  %s1 = inlined_call_operand.vmem [shape: f32[32,4], index: 1, kind: output, shape index: {}]
  // Predicated region
  $region2: #{tile.33} parent=0 // pred_check
    _
  $region3: #{tile.33} parent=0 // pred_check_branch
    %3 = sbr.rel (0) target = $region5
  $region4: #{tile.33} parent=0 // pred_region
    _
  $region5: #{tile.33} parent=0 // pred_fallthru
    _
  %v4 = vld [vmem:[%s0] ss:$0 sm:$0xff]
  %5 = vst [vmem:[%s1] sm:$0xff] %v4
  %s6 = scalar_lea.vmem %s1, 8
  %7 = vst [vmem:[%s6] sm:$0xff] %v4
  %s8 = scalar_lea.vmem %s1, 16
  %9 = vst [vmem:[%s8] sm:$0xff] %v4
  %s10 = scalar_lea.vmem %s1, 24
  %11 = vst [vmem:[%s10] sm:$0xff] %v4

// kernel: tile.34
$region0: #{tile.34}
  %s0 = inlined_call_operand.vmem [shape: f32[32,4], index: 0, kind: input, shape index: {}]
  %s1 = inlined_call_operand.vmem [shape: f32[1,128], index: 1, kind: output, shape index: {}]
  $region1: #{tile.34} parent=0
    #allocation0 [shape = 'u8[4096]{0}', space=vmem, size = 0x1000, scoped, tag = 'scoped mem for output reshape']
    %v2 = vld [vmem:[%s0] sm:$0x1]
    %vm3 = vcmask 31744
    %4 = vst.msk [vmem:[#allocation0] sm:$0x1] %vm3, %v2
    %s5 = scalar_lea.vmem %s0, 31
    %v6 = vld [vmem:[%s5] sm:$0x1]
    %7 = vrot.lane.b32.xlu0 %v6, 124
    %v8 = vpop.permute.xlu0 %7
    %vm9 = vcmask 1048544
    %10 = vst.msk [vmem:[#allocation0] sm:$0x1] %vm9, %v8
    %s11 = scalar_lea.vmem %s0, 30
    %v12 = vld [vmem:[%s11] sm:$0x1]
    %13 = vrot.lane.b32.xlu0 %v12, 120
    %v14 = vpop.permute.xlu0 %13
    %vm15 = vcmask 1015744
    %16 = vst.msk [vmem:[#allocation0] sm:$0x1] %vm15, %v14
    %s17 = scalar_lea.vmem %s0, 29
    %v18 = vld [vmem:[%s17] sm:$0x1]
    %19 = vrot.lane.b32.xlu0 %v18, 116
    %v20 = vpop.permute.xlu0 %19
    %vm21 = vcmask 982944
    %22 = vst.msk [vmem:[#allocation0] sm:$0x1] %vm21, %v20
    %s23 = scalar_lea.vmem %s0, 28
    %v24 = vld [vmem:[%s23] sm:$0x1]
    %25 = vrot.lane.b32.xlu0 %v24, 112
    %v26 = vpop.permute.xlu0 %25
    %vm27 = vcmask 950144
    %28 = vst.msk [vmem:[#allocation0] sm:$0x1] %vm27, %v26
    %s29 = scalar_lea.vmem %s0, 27
    %v30 = vld [vmem:[%s29] sm:$0x1]
    %31 = vrot.lane.b32.xlu0 %v30, 108
    %v32 = vpop.permute.xlu0 %31
    %vm33 = vcmask 917344
    %34 = vst.msk [vmem:[#allocation0] sm:$0x1] %vm33, %v32
    %s35 = scalar_lea.vmem %s0, 26
    %v36 = vld [vmem:[%s35] sm:$0x1]
    %37 = vrot.lane.b32.xlu0 %v36, 104
    %v38 = vpop.permute.xlu0 %37
    %vm39 = vcmask 884544
    %40 = vst.msk [vmem:[#allocation0] sm:$0x1] %vm39, %v38
    %s41 = scalar_lea.vmem %s0, 25
    %v42 = vld [vmem:[%s41] sm:$0x1]
    %43 = vrot.lane.b32.xlu0 %v42, 100
    %v44 = vpop.permute.xlu0 %43
    %vm45 = vcmask 851744
    %46 = vst.msk [vmem:[#allocation0] sm:$0x1] %vm45, %v44
    %s47 = scalar_lea.vmem %s0, 24
    %v48 = vld [vmem:[%s47] sm:$0x1]
    %49 = vrot.lane.b32.xlu0 %v48, 96
    %v50 = vpop.permute.xlu0 %49
    %vm51 = vcmask 818944
    %52 = vst.msk [vmem:[#allocation0] sm:$0x1] %vm51, %v50
    %s53 = scalar_lea.vmem %s0, 23
    %v54 = vld [vmem:[%s53] sm:$0x1]
    %55 = vrot.lane.b32.xlu0 %v54, 92
    %v56 = vpop.permute.xlu0 %55
    %vm57 = vcmask 786144
    %58 = vst.msk [vmem:[#allocation0] sm:$0x1] %vm57, %v56
    %s59 = scalar_lea.vmem %s0, 22
    %v60 = vld [vmem:[%s59] sm:$0x1]
    %61 = vrot.lane.b32.xlu0 %v60, 88
    %v62 = vpop.permute.xlu0 %61
    %vm63 = vcmask 753344
    %64 = vst.msk [vmem:[#allocation0] sm:$0x1] %vm63, %v62
    %s65 = scalar_lea.vmem %s0, 21
    %v66 = vld [vmem:[%s65] sm:$0x1]
    %67 = vrot.lane.b32.xlu0 %v66, 84
    %v68 = vpop.permute.xlu0 %67
    %vm69 = vcmask 720544
    %70 = vst.msk [vmem:[#allocation0] sm:$0x1] %vm69, %v68
    %s71 = scalar_lea.vmem %s0, 20
    %v72 = vld [vmem:[%s71] sm:$0x1]
    %73 = vrot.lane.b32.xlu0 %v72, 80
    %v74 = vpop.permute.xlu0 %73
    %vm75 = vcmask 687744
    %76 = vst.msk [vmem:[#allocation0] sm:$0x1] %vm75, %v74
    %s77 = scalar_lea.vmem %s0, 19
    %v78 = vld [vmem:[%s77] sm:$0x1]
    %79 = vrot.lane.b32.xlu0 %v78, 76
    %v80 = vpop.permute.xlu0 %79
    %vm81 = vcmask 654944
    %82 = vst.msk [vmem:[#allocation0] sm:$0x1] %vm81, %v80
    %s83 = scalar_lea.vmem %s0, 18
    %v84 = vld [vmem:[%s83] sm:$0x1]
    %85 = vrot.lane.b32.xlu0 %v84, 72
    %v86 = vpop.permute.xlu0 %85
    %vm87 = vcmask 622144
    %88 = vst.msk [vmem:[#allocation0] sm:$0x1] %vm87, %v86
    %s89 = scalar_lea.vmem %s0, 17
    %v90 = vld [vmem:[%s89] sm:$0x1]
    %91 = vrot.lane.b32.xlu0 %v90, 68
    %v92 = vpop.permute.xlu0 %91
    %vm93 = vcmask 589344
    %94 = vst.msk [vmem:[#allocation0] sm:$0x1] %vm93, %v92
    %s95 = scalar_lea.vmem %s0, 16
    %v96 = vld [vmem:[%s95] sm:$0x1]
    %97 = vrot.lane.b32.xlu0 %v96, 64
    %v98 = vpop.permute.xlu0 %97
    %vm99 = vcmask 556544
    %100 = vst.msk [vmem:[#allocation0] sm:$0x1] %vm99, %v98
    %s101 = scalar_lea.vmem %s0, 15
    %v102 = vld [vmem:[%s101] sm:$0x1]
    %103 = vrot.lane.b32.xlu0 %v102, 60
    %v104 = vpop.permute.xlu0 %103
    %vm105 = vcmask 523744
    %106 = vst.msk [vmem:[#allocation0] sm:$0x1] %vm105, %v104
    %s107 = scalar_lea.vmem %s0, 14
    %v108 = vld [vmem:[%s107] sm:$0x1]
    %109 = vrot.lane.b32.xlu0 %v108, 56
    %v110 = vpop.permute.xlu0 %109
    %vm111 = vcmask 490944
    %112 = vst.msk [vmem:[#allocation0] sm:$0x1] %vm111, %v110
    %s113 = scalar_lea.vmem %s0, 13
    %v114 = vld [vmem:[%s113] sm:$0x1]
    %115 = vrot.lane.b32.xlu0 %v114, 52
    %v116 = vpop.permute.xlu0 %115
    %vm117 = vcmask 458144
    %118 = vst.msk [vmem:[#allocation0] sm:$0x1] %vm117, %v116
    %s119 = scalar_lea.vmem %s0, 12
    %v120 = vld [vmem:[%s119] sm:$0x1]
    %121 = vrot.lane.b32.xlu0 %v120, 48
    %v122 = vpop.permute.xlu0 %121
    %vm123 = vcmask 425344
    %124 = vst.msk [vmem:[#allocation0] sm:$0x1] %vm123, %v122
    %s125 = scalar_lea.vmem %s0, 11
    %v126 = vld [vmem:[%s125] sm:$0x1]
    %127 = vrot.lane.b32.xlu0 %v126, 44
    %v128 = vpop.permute.xlu0 %127
    %vm129 = vcmask 392544
    %130 = vst.msk [vmem:[#allocation0] sm:$0x1] %vm129, %v128
    %s131 = scalar_lea.vmem %s0, 10
    %v132 = vld [vmem:[%s131] sm:$0x1]
    %133 = vrot.lane.b32.xlu0 %v132, 40
    %v134 = vpop.permute.xlu0 %133
    %vm135 = vcmask 359744
    %136 = vst.msk [vmem:[#allocation0] sm:$0x1] %vm135, %v134
    %s137 = scalar_lea.vmem %s0, 9
    %v138 = vld [vmem:[%s137] sm:$0x1]
    %139 = vrot.lane.b32.xlu0 %v138, 36
    %v140 = vpop.permute.xlu0 %139
    %vm141 = vcmask 326944
    %142 = vst.msk [vmem:[#allocation0] sm:$0x1] %vm141, %v140
    %s143 = scalar_lea.vmem %s0, 8
    %v144 = vld [vmem:[%s143] sm:$0x1]
    %145 = vrot.lane.b32.xlu0 %v144, 32
    %v146 = vpop.permute.xlu0 %145
    %vm147 = vcmask 294144
    %148 = vst.msk [vmem:[#allocation0] sm:$0x1] %vm147, %v146
    %s149 = scalar_lea.vmem %s0, 7
    %v150 = vld [vmem:[%s149] sm:$0x1]
    %151 = vrot.lane.b32.xlu0 %v150, 28
    %v152 = vpop.permute.xlu0 %151
    %vm153 = vcmask 261344
    %154 = vst.msk [vmem:[#allocation0] sm:$0x1] %vm153, %v152
    %s155 = scalar_lea.vmem %s0, 6
    %v156 = vld [vmem:[%s155] sm:$0x1]
    %157 = vrot.lane.b32.xlu0 %v156, 24
    %v158 = vpop.permute.xlu0 %157
    %vm159 = vcmask 228544
    %160 = vst.msk [vmem:[#allocation0] sm:$0x1] %vm159, %v158
    %s161 = scalar_lea.vmem %s0, 5
    %v162 = vld [vmem:[%s161] sm:$0x1]
    %163 = vrot.lane.b32.xlu0 %v162, 20
    %v164 = vpop.permute.xlu0 %163
    %vm165 = vcmask 195744
    %166 = vst.msk [vmem:[#allocation0] sm:$0x1] %vm165, %v164
    %s167 = scalar_lea.vmem %s0, 4
    %v168 = vld [vmem:[%s167] sm:$0x1]
    %169 = vrot.lane.b32.xlu0 %v168, 16
    %v170 = vpop.permute.xlu0 %169
    %vm171 = vcmask 162944
    %172 = vst.msk [vmem:[#allocation0] sm:$0x1] %vm171, %v170
    %s173 = scalar_lea.vmem %s0, 3
    %v174 = vld [vmem:[%s173] sm:$0x1]
    %175 = vrot.lane.b32.xlu0 %v174, 12
    %v176 = vpop.permute.xlu0 %175
    %vm177 = vcmask 130144
    %178 = vst.msk [vmem:[#allocation0] sm:$0x1] %vm177, %v176
    %s179 = scalar_lea.vmem %s0, 2
    %v180 = vld [vmem:[%s179] sm:$0x1]
    %181 = vrot.lane.b32.xlu0 %v180, 8
    %v182 = vpop.permute.xlu0 %181
    %vm183 = vcmask 97344
    %184 = vst.msk [vmem:[#allocation0] sm:$0x1] %vm183, %v182
    %s185 = scalar_lea.vmem %s0, 1
    %v186 = vld [vmem:[%s185] sm:$0x1]
    %187 = vrot.lane.b32.xlu0 %v186, 4
    %v188 = vpop.permute.xlu0 %187
    %vm189 = vcmask 64544
    %190 = vst.msk [vmem:[#allocation0] sm:$0x1] %vm189, %v188
    %s192 = ssub.s32 2, 1
    %v193 = vld [vmem:[#allocation0] sm:%s192]
    %s195 = ssub.s32 2, 1
    %196 = vst [vmem:[%s1] sm:%s195] %v193

// kernel: residual_block.4
$region0: #{residual_block.4}
  #allocation0 [shape = 'u32[]', space=smem, size = 0x4, offset = 0x4, fixed_abs, tag = 'smem constant byte address 0x4 - core index']
  #allocation1 [shape = 'u32[72,128]{1,0:T(1,128)}', space=vmem, size = 0x9000, scoped, tag = 'internal scratch']
  %s0 = inlined_call_operand.vmem [shape: f32[1,18,144], index: 0, kind: input, shape index: {}]
  %s1 = inlined_call_operand.vmem [shape: f32[3,144,128], index: 1, kind: input, shape index: {}]
  %s2 = inlined_call_operand.vmem [shape: f32[1,144], index: 2, kind: input, shape index: {}]
  %s3 = inlined_call_operand.vmem [shape: f32[1,144], index: 3, kind: input, shape index: {}]
  %s4 = inlined_call_operand.vmem [shape: f32[18,144], index: 4, kind: input, shape index: {}]
  %s5 = inlined_call_operand.vmem [shape: f32[1,16,128], index: 5, kind: output, shape index: {0}]
  %s6 = inlined_call_operand.vmem [shape: f32[1,1,128], index: 6, kind: output, shape index: {1}]
  %s7 = inlined_call_operand.vmem [shape: f32[1,1,128], index: 7, kind: output, shape index: {2}]
  %8 = xla_tuple %s5, %s6, %s7
  %s9 = sld [smem:[#allocation0]]
  $region46: #{residual_block.4} parent=0
    _
  %s11 = ssub.s32 1, %s9
  %s12 = scalar_select 0, %s11, %s9
  // Predicated region
  $region2: #{residual_block.4} parent=0 // pred_check
    _
  $region3: #{residual_block.4} parent=0 // pred_check_branch
    %14 = sbr.rel (0) target = $region5
  $region4: #{residual_block.4} parent=0 // pred_region
    _
  $region5: #{residual_block.4} parent=0 // pred_fallthru
    _
  // Predicated region
  $region6: #{residual_block.4} parent=0 // pred_check
    _
  $region7: #{residual_block.4} parent=0 // pred_check_branch
    %16 = sbr.rel (0) target = $region9
  $region8: #{residual_block.4} parent=0 // pred_region
    _
  $region9: #{residual_block.4} parent=0 // pred_fallthru
    _
  // Predicated region
  $region10: #{residual_block.4} parent=0 // pred_check
    _
  $region11: #{residual_block.4} parent=0 // pred_check_branch
    %18 = sbr.rel (0) target = $region13
  $region12: #{residual_block.4} parent=0 // pred_region
    _
  $region13: #{residual_block.4} parent=0 // pred_fallthru
    _
  // Predicated region
  $region14: #{residual_block.4} parent=0 // pred_check
    _
  $region15: #{residual_block.4} parent=0 // pred_check_branch
    %20 = sbr.rel (0) target = $region17
  $region16: #{residual_block.4} parent=0 // pred_region
    _
  $region17: #{residual_block.4} parent=0 // pred_fallthru
    _
  // Predicated region
  $region18: #{residual_block.4} parent=0 // pred_check
    _
  $region19: #{residual_block.4} parent=0 // pred_check_branch
    %22 = sbr.rel (0) target = $region21
  $region20: #{residual_block.4} parent=0 // pred_region
    _
  $region21: #{residual_block.4} parent=0 // pred_fallthru
    _
  %v23 = vld [vmem:[%s1] sm:$0xff]
  %v24 = vld [vmem:[%s1 + $0x8] sm:$0xff]
  %v25 = vld [vmem:[%s1 + $0x10] sm:$0xff]
  %v26 = vld [vmem:[%s1 + $0x18] sm:$0xff]
  %v27 = vld [vmem:[%s1 + $0x20] sm:$0xff]
  %v28 = vld [vmem:[%s1 + $0x28] sm:$0xff]
  %v29 = vld [vmem:[%s1 + $0x30] sm:$0xff]
  %v30 = vld [vmem:[%s1 + $0x38] sm:$0xff]
  %v31 = vld [vmem:[%s1 + $0x40] sm:$0xff]
  %v32 = vld [vmem:[%s1 + $0x48] sm:$0xff]
  %v33 = vld [vmem:[%s1 + $0x50] sm:$0xff]
  %v34 = vld [vmem:[%s1 + $0x58] sm:$0xff]
  %v35 = vld [vmem:[%s1 + $0x60] sm:$0xff]
  %v36 = vld [vmem:[%s1 + $0x68] sm:$0xff]
  %v37 = vld [vmem:[%s1 + $0x70] sm:$0xff]
  %v38 = vld [vmem:[%s1 + $0x78] sm:$0xff]
  %v39 = vld [vmem:[%s1 + $0x80] sm:$0xff]
  %v40 = vld [vmem:[%s1 + $0x88] sm:$0xff]
  %s41 = scalar_lea.vmem %s1, 144
  %v42 = vld [vmem:[%s41] sm:$0xff]
  %v43 = vld [vmem:[%s41 + $0x8] sm:$0xff]
  %v44 = vld [vmem:[%s41 + $0x10] sm:$0xff]
  %v45 = vld [vmem:[%s41 + $0x18] sm:$0xff]
  %v46 = vld [vmem:[%s41 + $0x20] sm:$0xff]
  %v47 = vld [vmem:[%s41 + $0x28] sm:$0xff]
  %v48 = vld [vmem:[%s41 + $0x30] sm:$0xff]
  %v49 = vld [vmem:[%s41 + $0x38] sm:$0xff]
  %v50 = vld [vmem:[%s41 + $0x40] sm:$0xff]
  %v51 = vld [vmem:[%s41 + $0x48] sm:$0xff]
  %v52 = vld [vmem:[%s41 + $0x50] sm:$0xff]
  %v53 = vld [vmem:[%s41 + $0x58] sm:$0xff]
  %v54 = vld [vmem:[%s41 + $0x60] sm:$0xff]
  %v55 = vld [vmem:[%s41 + $0x68] sm:$0xff]
  %v56 = vld [vmem:[%s41 + $0x70] sm:$0xff]
  %v57 = vld [vmem:[%s41 + $0x78] sm:$0xff]
  %v58 = vld [vmem:[%s41 + $0x80] sm:$0xff]
  %v59 = vld [vmem:[%s41 + $0x88] sm:$0xff]
  %s60 = scalar_lea.vmem %s1, 288
  %v61 = vld [vmem:[%s60] sm:$0xff]
  %v62 = vld [vmem:[%s60 + $0x8] sm:$0xff]
  %v63 = vld [vmem:[%s60 + $0x10] sm:$0xff]
  %v64 = vld [vmem:[%s60 + $0x18] sm:$0xff]
  %v65 = vld [vmem:[%s60 + $0x20] sm:$0xff]
  %v66 = vld [vmem:[%s60 + $0x28] sm:$0xff]
  %v67 = vld [vmem:[%s60 + $0x30] sm:$0xff]
  %v68 = vld [vmem:[%s60 + $0x38] sm:$0xff]
  %v69 = vld [vmem:[%s60 + $0x40] sm:$0xff]
  %v70 = vld [vmem:[%s60 + $0x48] sm:$0xff]
  %v71 = vld [vmem:[%s60 + $0x50] sm:$0xff]
  %v72 = vld [vmem:[%s60 + $0x58] sm:$0xff]
  %v73 = vld [vmem:[%s60 + $0x60] sm:$0xff]
  %v74 = vld [vmem:[%s60 + $0x68] sm:$0xff]
  %v75 = vld [vmem:[%s60 + $0x70] sm:$0xff]
  %v76 = vld [vmem:[%s60 + $0x78] sm:$0xff]
  %v77 = vld [vmem:[%s60 + $0x80] sm:$0xff]
  %v78 = vld [vmem:[%s60 + $0x88] sm:$0xff]
  %v79 = vld [vmem:[%s2] sm:$0x3]
  %v80 = vld [vmem:[%s3] sm:$0x3]
  %v81 = vld [vmem:[%s4] sm:$0xff]
  %v82 = vld [vmem:[%s4 + $0x8] sm:$0xff]
  %v83 = vld [vmem:[%s4 + $0x10] sm:$0xff]
  %v84 = vld [vmem:[%s4 + $0x18] sm:$0xff]
  %v85 = vld [vmem:[%s4 + $0x20] sm:$0x3]
  %v86 = vld [vmem:[%s4 + $0x28] sm:$0x3]
  %v87 = vld [vmem:[%s0] sm:$0xff]
  %v88 = vld [vmem:[%s0 + $0x8] sm:$0xff]
  %v89 = vld [vmem:[%s0 + $0x10] sm:$0xff]
  %v90 = vld [vmem:[%s0 + $0x18] sm:$0xff]
  %v91 = vld [vmem:[%s0 + $0x20] sm:$0x3]
  %v92 = vld [vmem:[%s0 + $0x28] sm:$0x3]
  %v94 = vperm.slane %v79, 0
  %v95 = vperm.slane %v79, 1
  %v98 = vmul.f32 %v87, %v94
  %v99 = vmul.f32 %v88, %v95
  %v100 = vmul.f32 %v89, %v94
  %v101 = vmul.f32 %v90, %v95
  %v102 = vmul.f32 %v91, %v94
  %v103 = vmul.f32 %v92, %v95
  %v105 = vperm.slane %v80, 0
  %v106 = vperm.slane %v80, 1
  %v109 = vadd.f32 %v98, %v105
  %v110 = vadd.f32 %v99, %v106
  %v111 = vadd.f32 %v100, %v105
  %v112 = vadd.f32 %v101, %v106
  %v113 = vadd.f32 %v102, %v105
  %v114 = vadd.f32 %v103, %v106
  %v115 = vmax.f32 %v109, 0.0
  %v116 = vmax.f32 %v110, 0.0
  %v117 = vmax.f32 %v111, 0.0
  %v118 = vmax.f32 %v112, 0.0
  %v119 = vmax.f32 %v113, 0.0
  %v120 = vmax.f32 %v114, 0.0
  %v121 = vmul.f32 %v115, %v81
  %v122 = vmul.f32 %v116, %v82
  %v123 = vmul.f32 %v117, %v83
  %v124 = vmul.f32 %v118, %v84
  %v125 = vmul.f32 %v119, %v85
  %v126 = vmul.f32 %v120, %v86
  %vm133 = vcmask 1046528
  %v134 = vrot.slane %v121, 1
  %v135 = vrot.slane %v123, 1
  %v136 = vsel %vm133, %v134, %v135
  %v137 = vrot.slane %v122, 1
  %v138 = vrot.slane %v124, 1
  %v139 = vsel %vm133, %v137, %v138
  %v140 = vrot.slane %v125, 1
  %v141 = vsel %vm133, %v135, %v140
  %v142 = vrot.slane %v126, 1
  %v143 = vsel %vm133, %v138, %v142
  %vm146 = vcmask 130048
  %v147 = vsel %vm146, %v139, 0
  %v149 = vsel %vm146, %v143, 0
  %151 = vmatpush.msra.mxu0 %v57
  %152 = vmatpush.msra.mxu0 %v56
  %153 = vmatpush.msra.mxu0 %v55
  %154 = vmatpush.msra.mxu0 %v54
  %155 = vmatpush.msra.mxu0 %v53
  %156 = vmatpush.msra.mxu0 %v52
  %157 = vmatpush.msra.mxu0 %v51
  %158 = vmatpush.msra.mxu0 %v50
  %159 = vmatpush.msra.mxu0 %v49
  %160 = vmatpush.msra.mxu0 %v48
  %161 = vmatpush.msra.mxu0 %v47
  %162 = vmatpush.msra.mxu0 %v46
  %163 = vmatpush.msra.mxu0 %v45
  %164 = vmatpush.msra.mxu0 %v44
  %165 = vmatpush.msra.mxu0 %v43
  %166 = vmatpush.msra.mxu0 %v42
  %167 = vmatmul.f32.gmra.mxu0 %v136
  %v168 = vpop.f32.mrf.mxu0
  %v169 = vadd.f32 0.0, %v168
  %170 = vmatmul.f32.gmra.mxu0 %v141
  %v171 = vpop.f32.mrf.mxu0
  %v172 = vadd.f32 0.0, %v171
  %173 = vdwg.mxu0
  %174 = vmatpush.msra.mxu0 0.0
  %175 = vmatpush.msra.mxu0 0.0
  %176 = vmatpush.msra.mxu0 0.0
  %177 = vmatpush.msra.mxu0 0.0
  %178 = vmatpush.msra.mxu0 0.0
  %179 = vmatpush.msra.mxu0 0.0
  %180 = vmatpush.msra.mxu0 0.0
  %181 = vmatpush.msra.mxu0 0.0
  %182 = vmatpush.msra.mxu0 0.0
  %183 = vmatpush.msra.mxu0 0.0
  %184 = vmatpush.msra.mxu0 0.0
  %185 = vmatpush.msra.mxu0 0.0
  %186 = vmatpush.msra.mxu0 0.0
  %187 = vmatpush.msra.mxu0 0.0
  %188 = vmatpush.msra.mxu0 %v59
  %189 = vmatpush.msra.mxu0 %v58
  %190 = vmatmul.f32.gmra.mxu0 %v147
  %v191 = vpop.f32.mrf.mxu0
  %v192 = vadd.f32 %v169, %v191
  %193 = vmatmul.f32.gmra.mxu0 %v149
  %v194 = vpop.f32.mrf.mxu0
  %v195 = vadd.f32 %v172, %v194
  %196 = vdwg.mxu0
  %v197 = vsel %vm146, %v122, 0
  %v199 = vsel %vm146, %v124, 0
  %201 = vmatpush.msra.mxu0 %v38
  %202 = vmatpush.msra.mxu0 %v37
  %203 = vmatpush.msra.mxu0 %v36
  %204 = vmatpush.msra.mxu0 %v35
  %205 = vmatpush.msra.mxu0 %v34
  %206 = vmatpush.msra.mxu0 %v33
  %207 = vmatpush.msra.mxu0 %v32
  %208 = vmatpush.msra.mxu0 %v31
  %209 = vmatpush.msra.mxu0 %v30
  %210 = vmatpush.msra.mxu0 %v29
  %211 = vmatpush.msra.mxu0 %v28
  %212 = vmatpush.msra.mxu0 %v27
  %213 = vmatpush.msra.mxu0 %v26
  %214 = vmatpush.msra.mxu0 %v25
  %215 = vmatpush.msra.mxu0 %v24
  %216 = vmatpush.msra.mxu0 %v23
  %217 = vmatmul.f32.gmra.mxu0 %v121
  %v218 = vpop.f32.mrf.mxu0
  %v219 = vadd.f32 %v192, %v218
  %220 = vmatmul.f32.gmra.mxu0 %v123
  %v221 = vpop.f32.mrf.mxu0
  %v222 = vadd.f32 %v195, %v221
  %223 = vdwg.mxu0
  %224 = vmatpush.msra.mxu0 0.0
  %225 = vmatpush.msra.mxu0 0.0
  %226 = vmatpush.msra.mxu0 0.0
  %227 = vmatpush.msra.mxu0 0.0
  %228 = vmatpush.msra.mxu0 0.0
  %229 = vmatpush.msra.mxu0 0.0
  %230 = vmatpush.msra.mxu0 0.0
  %231 = vmatpush.msra.mxu0 0.0
  %232 = vmatpush.msra.mxu0 0.0
  %233 = vmatpush.msra.mxu0 0.0
  %234 = vmatpush.msra.mxu0 0.0
  %235 = vmatpush.msra.mxu0 0.0
  %236 = vmatpush.msra.mxu0 0.0
  %237 = vmatpush.msra.mxu0 0.0
  %238 = vmatpush.msra.mxu0 %v40
  %239 = vmatpush.msra.mxu0 %v39
  %240 = vmatmul.f32.gmra.mxu0 %v197
  %v241 = vpop.f32.mrf.mxu0
  %v242 = vadd.f32 %v219, %v241
  %243 = vmatmul.f32.gmra.mxu0 %v199
  %v244 = vpop.f32.mrf.mxu0
  %v245 = vadd.f32 %v222, %v244
  %246 = vdwg.mxu0
  %vm247 = vcmask 1045504
  %v248 = vrot.slane %v121, 2
  %v249 = vrot.slane %v123, 2
  %v250 = vsel %vm247, %v248, %v249
  %v251 = vrot.slane %v122, 2
  %v252 = vrot.slane %v124, 2
  %v253 = vsel %vm247, %v251, %v252
  %v254 = vrot.slane %v125, 2
  %v255 = vsel %vm247, %v249, %v254
  %v256 = vrot.slane %v126, 2
  %v257 = vsel %vm247, %v252, %v256
  %v260 = vsel %vm146, %v253, 0
  %v262 = vsel %vm146, %v257, 0
  %264 = vmatpush.msra.mxu0 %v76
  %265 = vmatpush.msra.mxu0 %v75
  %266 = vmatpush.msra.mxu0 %v74
  %267 = vmatpush.msra.mxu0 %v73
  %268 = vmatpush.msra.mxu0 %v72
  %269 = vmatpush.msra.mxu0 %v71
  %270 = vmatpush.msra.mxu0 %v70
  %271 = vmatpush.msra.mxu0 %v69
  %272 = vmatpush.msra.mxu0 %v68
  %273 = vmatpush.msra.mxu0 %v67
  %274 = vmatpush.msra.mxu0 %v66
  %275 = vmatpush.msra.mxu0 %v65
  %276 = vmatpush.msra.mxu0 %v64
  %277 = vmatpush.msra.mxu0 %v63
  %278 = vmatpush.msra.mxu0 %v62
  %279 = vmatpush.msra.mxu0 %v61
  %280 = vmatmul.f32.gmra.mxu0 %v250
  %v281 = vpop.f32.mrf.mxu0
  %v282 = vadd.f32 0.0, %v281
  %283 = vmatmul.f32.gmra.mxu0 %v255
  %v284 = vpop.f32.mrf.mxu0
  %v285 = vadd.f32 0.0, %v284
  %286 = vdwg.mxu0
  %287 = vmatpush.msra.mxu0 0.0
  %288 = vmatpush.msra.mxu0 0.0
  %289 = vmatpush.msra.mxu0 0.0
  %290 = vmatpush.msra.mxu0 0.0
  %291 = vmatpush.msra.mxu0 0.0
  %292 = vmatpush.msra.mxu0 0.0
  %293 = vmatpush.msra.mxu0 0.0
  %294 = vmatpush.msra.mxu0 0.0
  %295 = vmatpush.msra.mxu0 0.0
  %296 = vmatpush.msra.mxu0 0.0
  %297 = vmatpush.msra.mxu0 0.0
  %298 = vmatpush.msra.mxu0 0.0
  %299 = vmatpush.msra.mxu0 0.0
  %300 = vmatpush.msra.mxu0 0.0
  %301 = vmatpush.msra.mxu0 %v78
  %302 = vmatpush.msra.mxu0 %v77
  %303 = vmatmul.f32.gmra.mxu0 %v260
  %v304 = vpop.f32.mrf.mxu0
  %v305 = vadd.f32 %v282, %v304
  %306 = vmatmul.f32.gmra.mxu0 %v262
  %v307 = vpop.f32.mrf.mxu0
  %v308 = vadd.f32 %v285, %v307
  %309 = vdwg.mxu0
  %v310 = vadd.f32 %v242, %v305
  %v311 = vadd.f32 %v245, %v308
  %312 = vst [vmem:[%s5] sm:$0xff] %v310
  %313 = vst [vmem:[%s5 + $0x8] sm:$0xff] %v311
  %v314 = vadd.f32 %v310, %v311
  %v315 = vrot.slane %v314, 4
  %v316 = vadd.f32 %v314, %v315
  %v317 = vrot.slane %v316, 2
  %v318 = vadd.f32 %v316, %v317
  %v319 = vrot.slane %v318, 1
  %v320 = vadd.f32 %v318, %v319
  %321 = vst [vmem:[%s6] sm:$0x1] %v320
  %v322 = vmul.f32 %v310, %v310
  %v323 = vmul.f32 %v311, %v311
  %v324 = vadd.f32 %v322, %v323
  %v325 = vrot.slane %v324, 4
  %v326 = vadd.f32 %v324, %v325
  %v327 = vrot.slane %v326, 2
  %v328 = vadd.f32 %v326, %v327
  %v329 = vrot.slane %v328, 1
  %v330 = vadd.f32 %v328, %v329
  %331 = vst [vmem:[%s7] sm:$0x1] %v330
  // Predicated region
  $region22: #{residual_block.4} parent=0 // pred_check
    _
  $region23: #{residual_block.4} parent=0 // pred_check_branch
    %333 = sbr.rel (0) target = $region25
  $region24: #{residual_block.4} parent=0 // pred_region
    _
  $region25: #{residual_block.4} parent=0 // pred_fallthru
    _
  // Predicated region
  $region26: #{residual_block.4} parent=0 // pred_check
    _
  $region27: #{residual_block.4} parent=0 // pred_check_branch
    %335 = sbr.rel (0) target = $region29
  $region28: #{residual_block.4} parent=0 // pred_region
    _
  $region29: #{residual_block.4} parent=0 // pred_fallthru
    _
  // Predicated region
  $region30: #{residual_block.4} parent=0 // pred_check
    _
  $region31: #{residual_block.4} parent=0 // pred_check_branch
    %337 = sbr.rel (0) target = $region33
  $region32: #{residual_block.4} parent=0 // pred_region
    _
  $region33: #{residual_block.4} parent=0 // pred_fallthru
    _
  // Predicated region
  $region34: #{residual_block.4} parent=0 // pred_check
    _
  $region35: #{residual_block.4} parent=0 // pred_check_branch
    %339 = sbr.rel (0) target = $region37
  $region36: #{residual_block.4} parent=0 // pred_region
    _
  $region37: #{residual_block.4} parent=0 // pred_fallthru
    _
  // Predicated region
  $region38: #{residual_block.4} parent=0 // pred_check
    _
  $region39: #{residual_block.4} parent=0 // pred_check_branch
    %341 = sbr.rel (0) target = $region41
  $region40: #{residual_block.4} parent=0 // pred_region
    _
  $region41: #{residual_block.4} parent=0 // pred_fallthru
    _
  // Predicated region
  $region42: #{residual_block.4} parent=0 // pred_check
    _
  $region43: #{residual_block.4} parent=0 // pred_check_branch
    %343 = sbr.rel (0) target = $region45
  $region44: #{residual_block.4} parent=0 // pred_region
    _
  $region45: #{residual_block.4} parent=0 // pred_fallthru
    _

// kernel: residual_block.5
$region0: #{residual_block.5}
  #allocation0 [shape = 'u32[]', space=smem, size = 0x4, offset = 0x4, fixed_abs, tag = 'smem constant byte address 0x4 - core index']
  #allocation1 [shape = 'u32[72,128]{1,0:T(1,128)}', space=vmem, size = 0x9000, scoped, tag = 'internal scratch']
  %s0 = inlined_call_operand.vmem [shape: f32[1,16,128], index: 0, kind: input, shape index: {}]
  %s1 = inlined_call_operand.vmem [shape: f32[1,16,128], index: 1, kind: input, shape index: {}]
  %s2 = inlined_call_operand.vmem [shape: f32[1,128], index: 2, kind: input, shape index: {}]
  %s3 = inlined_call_operand.vmem [shape: f32[1,128], index: 3, kind: input, shape index: {}]
  %s4 = inlined_call_operand.vmem [shape: f32[1,16,128], index: 4, kind: output, shape index: {}]
  %s5 = sld [smem:[#allocation0]]
  $region26: #{residual_block.5} parent=0
    _
  %s7 = ssub.s32 1, %s5
  %s8 = scalar_select 0, %s7, %s5
  // Predicated region
  $region2: #{residual_block.5} parent=0 // pred_check
    _
  $region3: #{residual_block.5} parent=0 // pred_check_branch
    %10 = sbr.rel (0) target = $region5
  $region4: #{residual_block.5} parent=0 // pred_region
    _
  $region5: #{residual_block.5} parent=0 // pred_fallthru
    _
  // Predicated region
  $region6: #{residual_block.5} parent=0 // pred_check
    _
  $region7: #{residual_block.5} parent=0 // pred_check_branch
    %12 = sbr.rel (0) target = $region9
  $region8: #{residual_block.5} parent=0 // pred_region
    _
  $region9: #{residual_block.5} parent=0 // pred_fallthru
    _
  // Predicated region
  $region10: #{residual_block.5} parent=0 // pred_check
    _
  $region11: #{residual_block.5} parent=0 // pred_check_branch
    %14 = sbr.rel (0) target = $region13
  $region12: #{residual_block.5} parent=0 // pred_region
    _
  $region13: #{residual_block.5} parent=0 // pred_fallthru
    _
  // Predicated region
  $region14: #{residual_block.5} parent=0 // pred_check
    _
  $region15: #{residual_block.5} parent=0 // pred_check_branch
    %16 = sbr.rel (0) target = $region17
  $region16: #{residual_block.5} parent=0 // pred_region
    _
  $region17: #{residual_block.5} parent=0 // pred_fallthru
    _
  %v17 = vld [vmem:[%s0] sm:$0xff]
  %v18 = vld [vmem:[%s0 + $0x8] sm:$0xff]
  %v19 = vld [vmem:[%s1] sm:$0xff]
  %v20 = vld [vmem:[%s1 + $0x8] sm:$0xff]
  %v21 = vld [vmem:[%s2] sm:$0x1]
  %v23 = vperm.slane %v21, 0
  %v25 = vmul.f32 %v17, %v23
  %v26 = vmul.f32 %v18, %v23
  %v27 = vld [vmem:[%s3] sm:$0x1]
  %v29 = vperm.slane %v27, 0
  %v31 = vadd.f32 %v25, %v29
  %v32 = vadd.f32 %v26, %v29
  %v33 = vadd.f32 %v31, %v19
  %v34 = vadd.f32 %v32, %v20
  %v35 = vmax.f32 %v33, 0.0
  %v36 = vmax.f32 %v34, 0.0
  %37 = vst [vmem:[%s4] sm:$0xff] %v35
  %38 = vst [vmem:[%s4 + $0x8] sm:$0xff] %v36
  // Predicated region
  $region18: #{residual_block.5} parent=0 // pred_check
    _
  $region19: #{residual_block.5} parent=0 // pred_check_branch
    %40 = sbr.rel (0) target = $region21
  $region20: #{residual_block.5} parent=0 // pred_region
    _
  $region21: #{residual_block.5} parent=0 // pred_fallthru
    _
  // Predicated region
  $region22: #{residual_block.5} parent=0 // pred_check
    _
  $region23: #{residual_block.5} parent=0 // pred_check_branch
    %42 = sbr.rel (0) target = $region25
  $region24: #{residual_block.5} parent=0 // pred_region
    _
  $region25: #{residual_block.5} parent=0 // pred_fallthru
    _

// kernel: residual_block.3
$region0: #{residual_block.3}
  #allocation0 [shape = 'u32[]', space=smem, size = 0x4, offset = 0x4, fixed_abs, tag = 'smem constant byte address 0x4 - core index']
  #allocation1 [shape = 'u32[72,128]{1,0:T(1,128)}', space=vmem, size = 0x9000, scoped, tag = 'internal scratch']
  %s0 = inlined_call_operand.vmem [shape: f32[1,18,144], index: 0, kind: input, shape index: {}]
  %s1 = inlined_call_operand.vmem [shape: f32[3,144,144], index: 1, kind: input, shape index: {}]
  %s2 = inlined_call_operand.vmem [shape: f32[1,18,144], index: 2, kind: output, shape index: {0}]
  %s3 = inlined_call_operand.vmem [shape: f32[1,1,144], index: 3, kind: output, shape index: {1}]
  %s4 = inlined_call_operand.vmem [shape: f32[1,1,144], index: 4, kind: output, shape index: {2}]
  %5 = xla_tuple %s2, %s3, %s4
  %s6 = sld [smem:[#allocation0]]
  $region34: #{residual_block.3} parent=0
    _
  %s8 = ssub.s32 1, %s6
  %s9 = scalar_select 0, %s8, %s6
  // Predicated region
  $region2: #{residual_block.3} parent=0 // pred_check
    _
  $region3: #{residual_block.3} parent=0 // pred_check_branch
    %11 = sbr.rel (0) target = $region5
  $region4: #{residual_block.3} parent=0 // pred_region
    _
  $region5: #{residual_block.3} parent=0 // pred_fallthru
    _
  // Predicated region
  $region6: #{residual_block.3} parent=0 // pred_check
    _
  $region7: #{residual_block.3} parent=0 // pred_check_branch
    %13 = sbr.rel (0) target = $region9
  $region8: #{residual_block.3} parent=0 // pred_region
    _
  $region9: #{residual_block.3} parent=0 // pred_fallthru
    _
  %v14 = vld [vmem:[%s1] sm:$0xff]
  %v15 = vld [vmem:[%s1 + $0x8] sm:$0xff]
  %v16 = vld [vmem:[%s1 + $0x10] sm:$0xff]
  %v17 = vld [vmem:[%s1 + $0x18] sm:$0xff]
  %v18 = vld [vmem:[%s1 + $0x20] sm:$0xff]
  %v19 = vld [vmem:[%s1 + $0x28] sm:$0xff]
  %v20 = vld [vmem:[%s1 + $0x30] sm:$0xff]
  %v21 = vld [vmem:[%s1 + $0x38] sm:$0xff]
  %v22 = vld [vmem:[%s1 + $0x40] sm:$0xff]
  %v23 = vld [vmem:[%s1 + $0x48] sm:$0xff]
  %v24 = vld [vmem:[%s1 + $0x50] sm:$0xff]
  %v25 = vld [vmem:[%s1 + $0x58] sm:$0xff]
  %v26 = vld [vmem:[%s1 + $0x60] sm:$0xff]
  %v27 = vld [vmem:[%s1 + $0x68] sm:$0xff]
  %v28 = vld [vmem:[%s1 + $0x70] sm:$0xff]
  %v29 = vld [vmem:[%s1 + $0x78] sm:$0xff]
  %v30 = vld [vmem:[%s1 + $0x80] sm:$0xff]
  %v31 = vld [vmem:[%s1 + $0x88] sm:$0xff]
  %v32 = vld [vmem:[%s1 + $0x90] sm:$0xff]
  %v33 = vld [vmem:[%s1 + $0x98] sm:$0xff]
  %v34 = vld [vmem:[%s1 + $0xa0] sm:$0xff]
  %v35 = vld [vmem:[%s1 + $0xa8] sm:$0xff]
  %v36 = vld [vmem:[%s1 + $0xb0] sm:$0xff]
  %v37 = vld [vmem:[%s1 + $0xb8] sm:$0xff]
  %v38 = vld [vmem:[%s1 + $0xc0] sm:$0xff]
  %v39 = vld [vmem:[%s1 + $0xc8] sm:$0xff]
  %v40 = vld [vmem:[%s1 + $0xd0] sm:$0xff]
  %v41 = vld [vmem:[%s1 + $0xd8] sm:$0xff]
  %v42 = vld [vmem:[%s1 + $0xe0] sm:$0xff]
  %v43 = vld [vmem:[%s1 + $0xe8] sm:$0xff]
  %v44 = vld [vmem:[%s1 + $0xf0] sm:$0xff]
  %v45 = vld [vmem:[%s1 + $0xf8] sm:$0xff]
  %v46 = vld [vmem:[%s1 + $0x100] sm:$0xff]
  %v47 = vld [vmem:[%s1 + $0x108] sm:$0xff]
  %v48 = vld [vmem:[%s1 + $0x110] sm:$0xff]
  %v49 = vld [vmem:[%s1 + $0x118] sm:$0xff]
  %s50 = scalar_lea.vmem %s1, 288
  %v51 = vld [vmem:[%s50] sm:$0xff]
  %v52 = vld [vmem:[%s50 + $0x8] sm:$0xff]
  %v53 = vld [vmem:[%s50 + $0x10] sm:$0xff]
  %v54 = vld [vmem:[%s50 + $0x18] sm:$0xff]
  %v55 = vld [vmem:[%s50 + $0x20] sm:$0xff]
  %v56 = vld [vmem:[%s50 + $0x28] sm:$0xff]
  %v57 = vld [vmem:[%s50 + $0x30] sm:$0xff]
  %v58 = vld [vmem:[%s50 + $0x38] sm:$0xff]
  %v59 = vld [vmem:[%s50 + $0x40] sm:$0xff]
  %v60 = vld [vmem:[%s50 + $0x48] sm:$0xff]
  %v61 = vld [vmem:[%s50 + $0x50] sm:$0xff]
  %v62 = vld [vmem:[%s50 + $0x58] sm:$0xff]
  %v63 = vld [vmem:[%s50 + $0x60] sm:$0xff]
  %v64 = vld [vmem:[%s50 + $0x68] sm:$0xff]
  %v65 = vld [vmem:[%s50 + $0x70] sm:$0xff]
  %v66 = vld [vmem:[%s50 + $0x78] sm:$0xff]
  %v67 = vld [vmem:[%s50 + $0x80] sm:$0xff]
  %v68 = vld [vmem:[%s50 + $0x88] sm:$0xff]
  %v69 = vld [vmem:[%s50 + $0x90] sm:$0xff]
  %v70 = vld [vmem:[%s50 + $0x98] sm:$0xff]
  %v71 = vld [vmem:[%s50 + $0xa0] sm:$0xff]
  %v72 = vld [vmem:[%s50 + $0xa8] sm:$0xff]
  %v73 = vld [vmem:[%s50 + $0xb0] sm:$0xff]
  %v74 = vld [vmem:[%s50 + $0xb8] sm:$0xff]
  %v75 = vld [vmem:[%s50 + $0xc0] sm:$0xff]
  %v76 = vld [vmem:[%s50 + $0xc8] sm:$0xff]
  %v77 = vld [vmem:[%s50 + $0xd0] sm:$0xff]
  %v78 = vld [vmem:[%s50 + $0xd8] sm:$0xff]
  %v79 = vld [vmem:[%s50 + $0xe0] sm:$0xff]
  %v80 = vld [vmem:[%s50 + $0xe8] sm:$0xff]
  %v81 = vld [vmem:[%s50 + $0xf0] sm:$0xff]
  %v82 = vld [vmem:[%s50 + $0xf8] sm:$0xff]
  %v83 = vld [vmem:[%s50 + $0x100] sm:$0xff]
  %v84 = vld [vmem:[%s50 + $0x108] sm:$0xff]
  %v85 = vld [vmem:[%s50 + $0x110] sm:$0xff]
  %v86 = vld [vmem:[%s50 + $0x118] sm:$0xff]
  %s87 = scalar_lea.vmem %s1, 576
  %v88 = vld [vmem:[%s87] sm:$0xff]
  %v89 = vld [vmem:[%s87 + $0x8] sm:$0xff]
  %v90 = vld [vmem:[%s87 + $0x10] sm:$0xff]
  %v91 = vld [vmem:[%s87 + $0x18] sm:$0xff]
  %v92 = vld [vmem:[%s87 + $0x20] sm:$0xff]
  %v93 = vld [vmem:[%s87 + $0x28] sm:$0xff]
  %v94 = vld [vmem:[%s87 + $0x30] sm:$0xff]
  %v95 = vld [vmem:[%s87 + $0x38] sm:$0xff]
  %v96 = vld [vmem:[%s87 + $0x40] sm:$0xff]
  %v97 = vld [vmem:[%s87 + $0x48] sm:$0xff]
  %v98 = vld [vmem:[%s87 + $0x50] sm:$0xff]
  %v99 = vld [vmem:[%s87 + $0x58] sm:$0xff]
  %v100 = vld [vmem:[%s87 + $0x60] sm:$0xff]
  %v101 = vld [vmem:[%s87 + $0x68] sm:$0xff]
  %v102 = vld [vmem:[%s87 + $0x70] sm:$0xff]
  %v103 = vld [vmem:[%s87 + $0x78] sm:$0xff]
  %v104 = vld [vmem:[%s87 + $0x80] sm:$0xff]
  %v105 = vld [vmem:[%s87 + $0x88] sm:$0xff]
  %v106 = vld [vmem:[%s87 + $0x90] sm:$0xff]
  %v107 = vld [vmem:[%s87 + $0x98] sm:$0xff]
  %v108 = vld [vmem:[%s87 + $0xa0] sm:$0xff]
  %v109 = vld [vmem:[%s87 + $0xa8] sm:$0xff]
  %v110 = vld [vmem:[%s87 + $0xb0] sm:$0xff]
  %v111 = vld [vmem:[%s87 + $0xb8] sm:$0xff]
  %v112 = vld [vmem:[%s87 + $0xc0] sm:$0xff]
  %v113 = vld [vmem:[%s87 + $0xc8] sm:$0xff]
  %v114 = vld [vmem:[%s87 + $0xd0] sm:$0xff]
  %v115 = vld [vmem:[%s87 + $0xd8] sm:$0xff]
  %v116 = vld [vmem:[%s87 + $0xe0] sm:$0xff]
  %v117 = vld [vmem:[%s87 + $0xe8] sm:$0xff]
  %v118 = vld [vmem:[%s87 + $0xf0] sm:$0xff]
  %v119 = vld [vmem:[%s87 + $0xf8] sm:$0xff]
  %v120 = vld [vmem:[%s87 + $0x100] sm:$0xff]
  %v121 = vld [vmem:[%s87 + $0x108] sm:$0xff]
  %v122 = vld [vmem:[%s87 + $0x110] sm:$0xff]
  %v123 = vld [vmem:[%s87 + $0x118] sm:$0xff]
  %v124 = vld [vmem:[%s0] sm:$0xff]
  %v125 = vld [vmem:[%s0 + $0x8] sm:$0xff]
  %v126 = vld [vmem:[%s0 + $0x10] sm:$0xff]
  %v127 = vld [vmem:[%s0 + $0x18] sm:$0xff]
  %v128 = vld [vmem:[%s0 + $0x20] sm:$0x3]
  %v129 = vld [vmem:[%s0 + $0x28] sm:$0x3]
  %vm136 = vcmask 1046528
  %v137 = vrot.slane %v124, 1
  %v138 = vrot.slane %v126, 1
  %v139 = vsel %vm136, %v137, %v138
  %v140 = vrot.slane %v125, 1
  %v141 = vrot.slane %v127, 1
  %v142 = vsel %vm136, %v140, %v141
  %v143 = vrot.slane %v128, 1
  %v144 = vsel %vm136, %v138, %v143
  %v145 = vrot.slane %v129, 1
  %v146 = vsel %vm136, %v141, %v145
  %vm149 = vcmask 130048
  %v150 = vsel %vm149, %v142, 0
  %v152 = vsel %vm149, %v146, 0
  %154 = vmatpush.msra.mxu0 %v81
  %155 = vmatpush.msra.mxu0 %v79
  %156 = vmatpush.msra.mxu0 %v77
  %157 = vmatpush.msra.mxu0 %v75
  %158 = vmatpush.msra.mxu0 %v73
  %159 = vmatpush.msra.mxu0 %v71
  %160 = vmatpush.msra.mxu0 %v69
  %161 = vmatpush.msra.mxu0 %v67
  %162 = vmatpush.msra.mxu0 %v65
  %163 = vmatpush.msra.mxu0 %v63
  %164 = vmatpush.msra.mxu0 %v61
  %165 = vmatpush.msra.mxu0 %v59
  %166 = vmatpush.msra.mxu0 %v57
  %167 = vmatpush.msra.mxu0 %v55
  %168 = vmatpush.msra.mxu0 %v53
  %169 = vmatpush.msra.mxu0 %v51
  %170 = vmatmul.f32.gmra.mxu0 %v139
  %v171 = vpop.f32.mrf.mxu0
  %v172 = vadd.f32 0.0, %v171
  %173 = vmatmul.f32.gmra.mxu0 %v144
  %v174 = vpop.f32.mrf.mxu0
  %v175 = vadd.f32 0.0, %v174
  %176 = vdwg.mxu0
  %177 = vmatpush.msra.mxu0 0.0
  %178 = vmatpush.msra.mxu0 0.0
  %179 = vmatpush.msra.mxu0 0.0
  %180 = vmatpush.msra.mxu0 0.0
  %181 = vmatpush.msra.mxu0 0.0
  %182 = vmatpush.msra.mxu0 0.0
  %183 = vmatpush.msra.mxu0 0.0
  %184 = vmatpush.msra.mxu0 0.0
  %185 = vmatpush.msra.mxu0 0.0
  %186 = vmatpush.msra.mxu0 0.0
  %187 = vmatpush.msra.mxu0 0.0
  %188 = vmatpush.msra.mxu0 0.0
  %189 = vmatpush.msra.mxu0 0.0
  %190 = vmatpush.msra.mxu0 0.0
  %191 = vmatpush.msra.mxu0 %v85
  %192 = vmatpush.msra.mxu0 %v83
  %193 = vmatmul.f32.gmra.mxu0 %v150
  %v194 = vpop.f32.mrf.mxu0
  %v195 = vadd.f32 %v172, %v194
  %196 = vmatmul.f32.gmra.mxu0 %v152
  %v197 = vpop.f32.mrf.mxu0
  %v198 = vadd.f32 %v175, %v197
  %199 = vdwg.mxu0
  %200 = vmatpush.msra.mxu0 %v82
  %201 = vmatpush.msra.mxu0 %v80
  %202 = vmatpush.msra.mxu0 %v78
  %203 = vmatpush.msra.mxu0 %v76
  %204 = vmatpush.msra.mxu0 %v74
  %205 = vmatpush.msra.mxu0 %v72
  %206 = vmatpush.msra.mxu0 %v70
  %207 = vmatpush.msra.mxu0 %v68
  %208 = vmatpush.msra.mxu0 %v66
  %209 = vmatpush.msra.mxu0 %v64
  %210 = vmatpush.msra.mxu0 %v62
  %211 = vmatpush.msra.mxu0 %v60
  %212 = vmatpush.msra.mxu0 %v58
  %213 = vmatpush.msra.mxu0 %v56
  %214 = vmatpush.msra.mxu0 %v54
  %215 = vmatpush.msra.mxu0 %v52
  %216 = vmatmul.f32.gmra.mxu0 %v139
  %v217 = vpop.f32.mrf.mxu0
  %v218 = vadd.f32 0.0, %v217
  %219 = vmatmul.f32.gmra.mxu0 %v144
  %v220 = vpop.f32.mrf.mxu0
  %v221 = vadd.f32 0.0, %v220
  %222 = vdwg.mxu0
  %223 = vmatpush.msra.mxu0 0.0
  %224 = vmatpush.msra.mxu0 0.0
  %225 = vmatpush.msra.mxu0 0.0
  %226 = vmatpush.msra.mxu0 0.0
  %227 = vmatpush.msra.mxu0 0.0
  %228 = vmatpush.msra.mxu0 0.0
  %229 = vmatpush.msra.mxu0 0.0
  %230 = vmatpush.msra.mxu0 0.0
  %231 = vmatpush.msra.mxu0 0.0
  %232 = vmatpush.msra.mxu0 0.0
  %233 = vmatpush.msra.mxu0 0.0
  %234 = vmatpush.msra.mxu0 0.0
  %235 = vmatpush.msra.mxu0 0.0
  %236 = vmatpush.msra.mxu0 0.0
  %237 = vmatpush.msra.mxu0 %v86
  %238 = vmatpush.msra.mxu0 %v84
  %239 = vmatmul.f32.gmra.mxu0 %v150
  %v240 = vpop.f32.mrf.mxu0
  %v241 = vadd.f32 %v218, %v240
  %242 = vmatmul.f32.gmra.mxu0 %v152
  %v243 = vpop.f32.mrf.mxu0
  %v244 = vadd.f32 %v221, %v243
  %245 = vdwg.mxu0
  %v246 = vsel %vm149, %v125, 0
  %v248 = vsel %vm149, %v127, 0
  %250 = vmatpush.msra.mxu0 %v44
  %251 = vmatpush.msra.mxu0 %v42
  %252 = vmatpush.msra.mxu0 %v40
  %253 = vmatpush.msra.mxu0 %v38
  %254 = vmatpush.msra.mxu0 %v36
  %255 = vmatpush.msra.mxu0 %v34
  %256 = vmatpush.msra.mxu0 %v32
  %257 = vmatpush.msra.mxu0 %v30
  %258 = vmatpush.msra.mxu0 %v28
  %259 = vmatpush.msra.mxu0 %v26
  %260 = vmatpush.msra.mxu0 %v24
  %261 = vmatpush.msra.mxu0 %v22
  %262 = vmatpush.msra.mxu0 %v20
  %263 = vmatpush.msra.mxu0 %v18
  %264 = vmatpush.msra.mxu0 %v16
  %265 = vmatpush.msra.mxu0 %v14
  %266 = vmatmul.f32.gmra.mxu0 %v124
  %v267 = vpop.f32.mrf.mxu0
  %v268 = vadd.f32 %v195, %v267
  %269 = vmatmul.f32.gmra.mxu0 %v126
  %v270 = vpop.f32.mrf.mxu0
  %v271 = vadd.f32 %v198, %v270
  %272 = vdwg.mxu0
  %273 = vmatpush.msra.mxu0 0.0
  %274 = vmatpush.msra.mxu0 0.0
  %275 = vmatpush.msra.mxu0 0.0
  %276 = vmatpush.msra.mxu0 0.0
  %277 = vmatpush.msra.mxu0 0.0
  %278 = vmatpush.msra.mxu0 0.0
  %279 = vmatpush.msra.mxu0 0.0
  %280 = vmatpush.msra.mxu0 0.0
  %281 = vmatpush.msra.mxu0 0.0
  %282 = vmatpush.msra.mxu0 0.0
  %283 = vmatpush.msra.mxu0 0.0
  %284 = vmatpush.msra.mxu0 0.0
  %285 = vmatpush.msra.mxu0 0.0
  %286 = vmatpush.msra.mxu0 0.0
  %287 = vmatpush.msra.mxu0 %v48
  %288 = vmatpush.msra.mxu0 %v46
  %289 = vmatmul.f32.gmra.mxu0 %v246
  %v290 = vpop.f32.mrf.mxu0
  %v291 = vadd.f32 %v268, %v290
  %292 = vmatmul.f32.gmra.mxu0 %v248
  %v293 = vpop.f32.mrf.mxu0
  %v294 = vadd.f32 %v271, %v293
  %295 = vdwg.mxu0
  %296 = vmatpush.msra.mxu0 %v45
  %297 = vmatpush.msra.mxu0 %v43
  %298 = vmatpush.msra.mxu0 %v41
  %299 = vmatpush.msra.mxu0 %v39
  %300 = vmatpush.msra.mxu0 %v37
  %301 = vmatpush.msra.mxu0 %v35
  %302 = vmatpush.msra.mxu0 %v33
  %303 = vmatpush.msra.mxu0 %v31
  %304 = vmatpush.msra.mxu0 %v29
  %305 = vmatpush.msra.mxu0 %v27
  %306 = vmatpush.msra.mxu0 %v25
  %307 = vmatpush.msra.mxu0 %v23
  %308 = vmatpush.msra.mxu0 %v21
  %309 = vmatpush.msra.mxu0 %v19
  %310 = vmatpush.msra.mxu0 %v17
  %311 = vmatpush.msra.mxu0 %v15
  %312 = vmatmul.f32.gmra.mxu0 %v124
  %v313 = vpop.f32.mrf.mxu0
  %v314 = vadd.f32 %v241, %v313
  %315 = vmatmul.f32.gmra.mxu0 %v126
  %v316 = vpop.f32.mrf.mxu0
  %v317 = vadd.f32 %v244, %v316
  %318 = vdwg.mxu0
  %319 = vmatpush.msra.mxu0 0.0
  %320 = vmatpush.msra.mxu0 0.0
  %321 = vmatpush.msra.mxu0 0.0
  %322 = vmatpush.msra.mxu0 0.0
  %323 = vmatpush.msra.mxu0 0.0
  %324 = vmatpush.msra.mxu0 0.0
  %325 = vmatpush.msra.mxu0 0.0
  %326 = vmatpush.msra.mxu0 0.0
  %327 = vmatpush.msra.mxu0 0.0
  %328 = vmatpush.msra.mxu0 0.0
  %329 = vmatpush.msra.mxu0 0.0
  %330 = vmatpush.msra.mxu0 0.0
  %331 = vmatpush.msra.mxu0 0.0
  %332 = vmatpush.msra.mxu0 0.0
  %333 = vmatpush.msra.mxu0 %v49
  %334 = vmatpush.msra.mxu0 %v47
  %335 = vmatmul.f32.gmra.mxu0 %v246
  %v336 = vpop.f32.mrf.mxu0
  %v337 = vadd.f32 %v314, %v336
  %338 = vmatmul.f32.gmra.mxu0 %v248
  %v339 = vpop.f32.mrf.mxu0
  %v340 = vadd.f32 %v317, %v339
  %341 = vdwg.mxu0
  %vm342 = vcmask 1045504
  %v343 = vrot.slane %v124, 2
  %v344 = vrot.slane %v126, 2
  %v345 = vsel %vm342, %v343, %v344
  %v346 = vrot.slane %v125, 2
  %v347 = vrot.slane %v127, 2
  %v348 = vsel %vm342, %v346, %v347
  %v349 = vrot.slane %v128, 2
  %v350 = vsel %vm342, %v344, %v349
  %v351 = vrot.slane %v129, 2
  %v352 = vsel %vm342, %v347, %v351
  %v355 = vsel %vm149, %v348, 0
  %v357 = vsel %vm149, %v352, 0
  %359 = vmatpush.msra.mxu0 %v118
  %360 = vmatpush.msra.mxu0 %v116
  %361 = vmatpush.msra.mxu0 %v114
  %362 = vmatpush.msra.mxu0 %v112
  %363 = vmatpush.msra.mxu0 %v110
  %364 = vmatpush.msra.mxu0 %v108
  %365 = vmatpush.msra.mxu0 %v106
  %366 = vmatpush.msra.mxu0 %v104
  %367 = vmatpush.msra.mxu0 %v102
  %368 = vmatpush.msra.mxu0 %v100
  %369 = vmatpush.msra.mxu0 %v98
  %370 = vmatpush.msra.mxu0 %v96
  %371 = vmatpush.msra.mxu0 %v94
  %372 = vmatpush.msra.mxu0 %v92
  %373 = vmatpush.msra.mxu0 %v90
  %374 = vmatpush.msra.mxu0 %v88
  %375 = vmatmul.f32.gmra.mxu0 %v345
  %v376 = vpop.f32.mrf.mxu0
  %v377 = vadd.f32 0.0, %v376
  %378 = vmatmul.f32.gmra.mxu0 %v350
  %v379 = vpop.f32.mrf.mxu0
  %v380 = vadd.f32 0.0, %v379
  %381 = vdwg.mxu0
  %382 = vmatpush.msra.mxu0 0.0
  %383 = vmatpush.msra.mxu0 0.0
  %384 = vmatpush.msra.mxu0 0.0
  %385 = vmatpush.msra.mxu0 0.0
  %386 = vmatpush.msra.mxu0 0.0
  %387 = vmatpush.msra.mxu0 0.0
  %388 = vmatpush.msra.mxu0 0.0
  %389 = vmatpush.msra.mxu0 0.0
  %390 = vmatpush.msra.mxu0 0.0
  %391 = vmatpush.msra.mxu0 0.0
  %392 = vmatpush.msra.mxu0 0.0
  %393 = vmatpush.msra.mxu0 0.0
  %394 = vmatpush.msra.mxu0 0.0
  %395 = vmatpush.msra.mxu0 0.0
  %396 = vmatpush.msra.mxu0 %v122
  %397 = vmatpush.msra.mxu0 %v120
  %398 = vmatmul.f32.gmra.mxu0 %v355
  %v399 = vpop.f32.mrf.mxu0
  %v400 = vadd.f32 %v377, %v399
  %401 = vmatmul.f32.gmra.mxu0 %v357
  %v402 = vpop.f32.mrf.mxu0
  %v403 = vadd.f32 %v380, %v402
  %404 = vdwg.mxu0
  %405 = vmatpush.msra.mxu0 %v119
  %406 = vmatpush.msra.mxu0 %v117
  %407 = vmatpush.msra.mxu0 %v115
  %408 = vmatpush.msra.mxu0 %v113
  %409 = vmatpush.msra.mxu0 %v111
  %410 = vmatpush.msra.mxu0 %v109
  %411 = vmatpush.msra.mxu0 %v107
  %412 = vmatpush.msra.mxu0 %v105
  %413 = vmatpush.msra.mxu0 %v103
  %414 = vmatpush.msra.mxu0 %v101
  %415 = vmatpush.msra.mxu0 %v99
  %416 = vmatpush.msra.mxu0 %v97
  %417 = vmatpush.msra.mxu0 %v95
  %418 = vmatpush.msra.mxu0 %v93
  %419 = vmatpush.msra.mxu0 %v91
  %420 = vmatpush.msra.mxu0 %v89
  %421 = vmatmul.f32.gmra.mxu0 %v345
  %v422 = vpop.f32.mrf.mxu0
  %v423 = vadd.f32 0.0, %v422
  %424 = vmatmul.f32.gmra.mxu0 %v350
  %v425 = vpop.f32.mrf.mxu0
  %v426 = vadd.f32 0.0, %v425
  %427 = vdwg.mxu0
  %428 = vmatpush.msra.mxu0 0.0
  %429 = vmatpush.msra.mxu0 0.0
  %430 = vmatpush.msra.mxu0 0.0
  %431 = vmatpush.msra.mxu0 0.0
  %432 = vmatpush.msra.mxu0 0.0
  %433 = vmatpush.msra.mxu0 0.0
  %434 = vmatpush.msra.mxu0 0.0
  %435 = vmatpush.msra.mxu0 0.0
  %436 = vmatpush.msra.mxu0 0.0
  %437 = vmatpush.msra.mxu0 0.0
  %438 = vmatpush.msra.mxu0 0.0
  %439 = vmatpush.msra.mxu0 0.0
  %440 = vmatpush.msra.mxu0 0.0
  %441 = vmatpush.msra.mxu0 0.0
  %442 = vmatpush.msra.mxu0 %v123
  %443 = vmatpush.msra.mxu0 %v121
  %444 = vmatmul.f32.gmra.mxu0 %v355
  %v445 = vpop.f32.mrf.mxu0
  %v446 = vadd.f32 %v423, %v445
  %447 = vmatmul.f32.gmra.mxu0 %v357
  %v448 = vpop.f32.mrf.mxu0
  %v449 = vadd.f32 %v426, %v448
  %450 = vdwg.mxu0
  %v451 = vadd.f32 %v291, %v400
  %v452 = vadd.f32 %v337, %v446
  %v453 = vadd.f32 %v294, %v403
  %v454 = vadd.f32 %v340, %v449
  %v455 = vlaneseq
  %vm456 = vcmp.ge.s32.totalorder %v455, 0
  %vm457 = vcmp.lt.s32.totalorder %v455, 144
  %vm458 = vmand %vm456, %vm457
  %459 = vst.msk [vmem:[%s2] ss:$8 sm:$0x3] %vm458, 0.0
  %460 = vst.msk [vmem:[%s2] ss:$8 sm:$0x0] %vm458, 0.0
  %vm465 = vcmask 1040384
  %v466 = vrot.slane %v451, 7
  %v467 = vrot.slane %v452, 7
  %v468 = vrot.slane %v453, 7
  %v469 = vsel %vm465, %v466, %v468
  %v470 = vrot.slane %v454, 7
  %v471 = vsel %vm465, %v467, %v470
  %478 = vst [vmem:[%s2] sm:$0xfe] %v466
  %vm479 = vcmask 130049
  %480 = vst.msk [vmem:[%s2 + $0x8] sm:$0xfe] %vm479, %v467
  %481 = vst [vmem:[%s2 + $0x10] sm:$0xff] %v469
  %482 = vst.msk [vmem:[%s2 + $0x18] sm:$0xff] %vm149, %v471
  %483 = vst [vmem:[%s2 + $0x20] sm:$0x1] %v468
  %vm484 = vcmask 122880
  %485 = vst.msk [vmem:[%s2 + $0x28] sm:$0x1] %vm484, %v470
  %s486 = scalar_lea.vmem %s2, 33
  %487 = vst.msk [vmem:[%s486] ss:$8 sm:$0x3] %vm458, 0.0
  %488 = vst.msk [vmem:[%s486] ss:$8 sm:$0x0] %vm458, 0.0
  %v489 = vadd.f32 %v451, %v453
  %v490 = vrot.slane %v489, 4
  %v491 = vadd.f32 %v489, %v490
  %v492 = vrot.slane %v491, 2
  %v493 = vadd.f32 %v491, %v492
  %v494 = vrot.slane %v493, 1
  %v495 = vadd.f32 %v493, %v494
  %v496 = vsel %vm149, %v452, 0.0
  %v497 = vsel %vm149, %v454, 0.0
  %v498 = vadd.f32 %v496, %v497
  %v499 = vrot.slane %v498, 4
  %v500 = vadd.f32 %v498, %v499
  %v501 = vrot.slane %v500, 2
  %v502 = vadd.f32 %v500, %v501
  %v503 = vrot.slane %v502, 1
  %v504 = vadd.f32 %v502, %v503
  %v507 = vrot.slane %v504, 7
  %v508 = vsel %vm465, %v495, %v507
  %510 = vst.msk [vmem:[%s3] sm:$0x3] %vm458, %v508
  %v511 = vmul.f32 %v451, %v451
  %v512 = vmul.f32 %v452, %v452
  %v513 = vmul.f32 %v453, %v453
  %v514 = vmul.f32 %v454, %v454
  %v515 = vadd.f32 %v511, %v513
  %v516 = vrot.slane %v515, 4
  %v517 = vadd.f32 %v515, %v516
  %v518 = vrot.slane %v517, 2
  %v519 = vadd.f32 %v517, %v518
  %v520 = vrot.slane %v519, 1
  %v521 = vadd.f32 %v519, %v520
  %v522 = vsel %vm149, %v512, 0.0
  %v523 = vsel %vm149, %v514, 0.0
  %v524 = vadd.f32 %v522, %v523
  %v525 = vrot.slane %v524, 4
  %v526 = vadd.f32 %v524, %v525
  %v527 = vrot.slane %v526, 2
  %v528 = vadd.f32 %v526, %v527
  %v529 = vrot.slane %v528, 1
  %v530 = vadd.f32 %v528, %v529
  %v533 = vrot.slane %v530, 7
  %v534 = vsel %vm465, %v521, %v533
  %536 = vst.msk [vmem:[%s4] sm:$0x3] %vm458, %v534
  // Predicated region
  $region10: #{residual_block.3} parent=0 // pred_check
    _
  $region11: #{residual_block.3} parent=0 // pred_check_branch
    %538 = sbr.rel (0) target = $region13
  $region12: #{residual_block.3} parent=0 // pred_region
    _
  $region13: #{residual_block.3} parent=0 // pred_fallthru
    _
  // Predicated region
  $region14: #{residual_block.3} parent=0 // pred_check
    _
  $region15: #{residual_block.3} parent=0 // pred_check_branch
    %540 = sbr.rel (0) target = $region17
  $region16: #{residual_block.3} parent=0 // pred_region
    _
  $region17: #{residual_block.3} parent=0 // pred_fallthru
    _
  // Predicated region
  $region18: #{residual_block.3} parent=0 // pred_check
    _
  $region19: #{residual_block.3} parent=0 // pred_check_branch
    %542 = sbr.rel (0) target = $region21
  $region20: #{residual_block.3} parent=0 // pred_region
    _
  $region21: #{residual_block.3} parent=0 // pred_fallthru
    _
  // Predicated region
  $region22: #{residual_block.3} parent=0 // pred_check
    _
  $region23: #{residual_block.3} parent=0 // pred_check_branch
    %544 = sbr.rel (0) target = $region25
  $region24: #{residual_block.3} parent=0 // pred_region
    _
  $region25: #{residual_block.3} parent=0 // pred_fallthru
    _
  // Predicated region
  $region26: #{residual_block.3} parent=0 // pred_check
    _
  $region27: #{residual_block.3} parent=0 // pred_check_branch
    %546 = sbr.rel (0) target = $region29
  $region28: #{residual_block.3} parent=0 // pred_region
    _
  $region29: #{residual_block.3} parent=0 // pred_fallthru
    _
  // Predicated region
  $region30: #{residual_block.3} parent=0 // pred_check
    _
  $region31: #{residual_block.3} parent=0 // pred_check_branch
    %548 = sbr.rel (0) target = $region33
  $region32: #{residual_block.3} parent=0 // pred_region
    _
  $region33: #{residual_block.3} parent=0 // pred_fallthru
    _

</llo_original>
